<compile_context>
chip_gen: v7x
topology: tpu7x:2x2x1
jax: 0.10.0
libtpu: 0.0.40
codegen_flags: <defaults>
</compile_context>

<pallas_src>
import math
from functools import partial

import jax
import jax.numpy as jnp
from jax import lax
from jax.experimental import pallas as pl
from jax.experimental.pallas import tpu as pltpu


def _layernorm(x, g, b, eps=1e-5):
    mu = jnp.mean(x, axis=-1, keepdims=True)
    var = jnp.mean((x - mu) ** 2, axis=-1, keepdims=True)
    return (x - mu) * lax.rsqrt(var + eps) * g + b


def fused_stack_kernel(num_heads,
                       a_ref, b_ref,
                       wq_ref, bq_ref, wkv_ref, bkv_ref,
                       wo_ref, bo_ref,
                       ln1g_ref, ln1b_ref,
                       w1_ref, b1_ref, w2_ref, b2_ref,
                       ln2g_ref, ln2b_ref,
                       out_ref, acc_ref):
    layer = pl.program_id(1)
    num_layers = pl.num_programs(1)
    bf16, f32 = jnp.bfloat16, jnp.float32

    # Seed the resident f32 activation state from A at the first layer of this
    # batch block; it stays in the VMEM scratch across all layers.
    @pl.when(layer == 0)
    def _():
        acc_ref[...] = a_ref[...].astype(f32)

    Bb, S_a, E = acc_ref.shape
    S_b = b_ref.shape[1]
    H = num_heads
    D = E // H

    # Flatten batch-block rows: all dense matmuls see M = Bb*S (better MXU
    # occupancy; weights are streamed once per batch block, not per row).
    x = acc_ref[...].reshape(Bb * S_a, E)                    # f32 running state
    y = b_ref[...].astype(f32).reshape(Bb * S_b, E)

    # Projections: pre-transposed bf16 weights, f32 accumulation.
    # 1/sqrt(D) is folded into Wq/bq; K & V fused into one (E -> 2E) matmul.
    q = jnp.dot(x.astype(bf16), wq_ref[0],
                preferred_element_type=f32) + bq_ref[0]      # (Bb*S_a, E)
    kv = jnp.dot(y.astype(bf16), wkv_ref[0],
                 preferred_element_type=f32) + bkv_ref[0]    # (Bb*S_b, 2E)
    k = kv[:, :E]
    v = kv[:, E:]

    def split_heads(t, s):                                   # (s, E) -> (H, s, D)
        return pltpu.einshape("shd->hsd", t.reshape(s, H, D))

    # Attention per batch row, heads as the single leading batch dim of the
    # score / P@V matmuls (no per-head slice+stack, no per-head matmul loop).
    ctx = []
    for bi in range(Bb):                                     # static, small
        qh = split_heads(q[bi * S_a:(bi + 1) * S_a, :], S_a)
        kh = split_heads(k[bi * S_b:(bi + 1) * S_b, :], S_b)
        vh = split_heads(v[bi * S_b:(bi + 1) * S_b, :], S_b)
        s = jnp.einsum('hqd,hkd->hqk', qh.astype(bf16), kh.astype(bf16),
                       preferred_element_type=f32)           # (H, S_a, S_b)
        s = s - jnp.max(s, axis=-1, keepdims=True)
        p = jnp.exp(s)
        p = p * pl.reciprocal(jnp.sum(p, axis=-1, keepdims=True), approx=True)
        o = jnp.einsum('hqk,hkd->hqd', p.astype(bf16), vh.astype(bf16),
                       preferred_element_type=f32)           # (H, S_a, D)
        ctx.append(pltpu.einshape("hsd->shd", o).reshape(S_a, E))
    attn = ctx[0] if Bb == 1 else jnp.concatenate(ctx, axis=0)   # (Bb*S_a, E)

    # Output projection: ONE (Bb*S_a, E) x (E, E) matmul against Wo^T.
    c = jnp.dot(attn.astype(bf16), wo_ref[0],
                preferred_element_type=f32) + bo_ref[0]

    # Residual + LayerNorm 1 (dropout == identity in eval mode).
    a1 = _layernorm(x + c, ln1g_ref[0], ln1b_ref[0])

    # FFN: Linear(E->F) -> ReLU -> Linear(F->E); bf16 operands, f32 accum.
    h1 = jnp.maximum(
        jnp.dot(a1.astype(bf16), w1_ref[0], preferred_element_type=f32)
        + b1_ref[0], 0.0)
    f = jnp.dot(h1.astype(bf16), w2_ref[0],
                preferred_element_type=f32) + b2_ref[0]

    # Residual + LayerNorm 2; new state stays resident in the scratch.
    acc_ref[...] = _layernorm(a1 + f, ln2g_ref[0], ln2b_ref[0]).reshape(Bb, S_a, E)

    # Single HBM writeback per batch block, at the last layer only.
    @pl.when(layer == num_layers - 1)
    def _():
        out_ref[...] = acc_ref[...].astype(out_ref.dtype)


def prepare_stacked_params(layer_params, num_heads, weight_dtype=jnp.bfloat16):
    """Stack per-layer weights (leading num_layers dim), pre-transposed for the kernel."""
    E = layer_params[0]["in_w"].shape[1]
    D = E // num_heads
    scale = 1.0 / math.sqrt(D)
    f32 = jnp.float32

    def stack(fn, dtype):
        return jnp.stack([fn(p) for p in layer_params], axis=0).astype(dtype)

    return dict(
        wq_t=stack(lambda p: p["in_w"][:E].T * scale, weight_dtype),      # (L, E, E)
        bq=stack(lambda p: p["in_b"][0:1] * scale, f32),                  # (L, 1, E)
        wkv_t=stack(lambda p: p["in_w"][E:].T, weight_dtype),             # (L, E, 2E)
        bkv=stack(lambda p: p["in_b"][1:3].reshape(1, 2 * E), f32),       # (L, 1, 2E)
        wo_t=stack(lambda p: p["out_w"].T, weight_dtype),                 # (L, E, E)
        bo=stack(lambda p: p["out_b"], f32),                              # (L, 1, E)
        ln1_g=stack(lambda p: p["ln1_g"], f32),
        ln1_b=stack(lambda p: p["ln1_b"], f32),
        w1_t=stack(lambda p: p["w1"].T, weight_dtype),                    # (L, E, F)
        b1=stack(lambda p: p["b1"], f32),                                 # (L, 1, F)
        w2_t=stack(lambda p: p["w2"].T, weight_dtype),                    # (L, F, E)
        b2=stack(lambda p: p["b2"], f32),                                 # (L, 1, E)
        ln2_g=stack(lambda p: p["ln2_g"], f32),
        ln2_b=stack(lambda p: p["ln2_b"], f32),
    )


def _pick_block_batch(batch_size, max_block=8):
    """Largest divisor of batch_size <= max_block keeping >= 2 parallel grid steps."""
    divisors = [d for d in range(1, min(batch_size, max_block) + 1)
                if batch_size % d == 0]
    good = [d for d in divisors if batch_size // d >= 2]
    return max(good) if good else max(divisors)


def _vmem_cap_bytes():
    try:
        return int(pltpu.get_tpu_info().vmem_capacity_bytes)
    except Exception:
        return 64 * 1024 * 1024          # conservative (v7x physical VMEM)


def _vmem_limit_bytes(Bb, S_a, S_b, E, F, H):
    bf, f32 = 2, 4
    weights = (E * E + E * 2 * E + E * E + E * F + F * E) * bf   # bf16 per-layer weights
    params = (7 * E + F) * f32                                   # biases + LN params
    acts = (Bb * S_a * E + Bb * S_b * E) * f32                   # A / B blocks
    state = 3 * Bb * S_a * E * f32                               # out block + scratch
    work = (Bb * S_a * (3 * E + F) + Bb * S_b * 3 * E
            + Bb * H * S_a * S_b) * f32                          # working set
    need = 2 * (weights + 8 * params + acts) + state + 2 * work  # double buffering + slack
    cap = int(0.9 * _vmem_cap_bytes())
    return int(min(max(need, 32 * 1024 * 1024), cap))


def stacked_cross_domain_attention(A, B, layer_params, num_heads, block_batch=None):
    """A: (S_a, batch, E), B: (S_b, batch, E) -> (S_a, batch, E)."""
    L = len(layer_params)
    A_bse = jnp.transpose(A, (1, 0, 2))   # (batch, S_a, E)
    B_bse = jnp.transpose(B, (1, 0, 2))   # (batch, S_b, E)
    Bsz, S_a, E = A_bse.shape
    S_b = B_bse.shape[1]
    H = num_heads
    sp = prepare_stacked_params(layer_params, num_heads)
    F = sp["w1_t"].shape[2]
    Bb = block_batch if block_batch is not None else _pick_block_batch(Bsz)
    assert Bsz % Bb == 0
    nb = Bsz // Bb

    def per_layer(r, c):
        return pl.BlockSpec((1, r, c), lambda b, l: (l, 0, 0))

    grid_spec = pltpu.PrefetchScalarGridSpec(
        num_scalar_prefetch=0,
        grid=(nb, L),                      # layers innermost -> state stays resident
        in_specs=[
            pl.BlockSpec((Bb, S_a, E), lambda b, l: (b, 0, 0)),   # A (seed)
            pl.BlockSpec((Bb, S_b, E), lambda b, l: (b, 0, 0)),   # B (kv stream)
            per_layer(E, E), per_layer(1, E),                     # Wq^T (scaled), bq
            per_layer(E, 2 * E), per_layer(1, 2 * E),             # Wkv^T, bkv
            per_layer(E, E), per_layer(1, E),                     # Wo^T, bo
            per_layer(1, E), per_layer(1, E),                     # ln1 gamma / beta
            per_layer(E, F), per_layer(1, F),                     # W1^T, b1
            per_layer(F, E), per_layer(1, E),                     # W2^T, b2
            per_layer(1, E), per_layer(1, E),                     # ln2 gamma / beta
        ],
        out_specs=pl.BlockSpec((Bb, S_a, E), lambda b, l: (b, 0, 0)),
        scratch_shapes=[pltpu.VMEM((Bb, S_a, E), jnp.float32)],   # resident activation
    )
    out = pl.pallas_call(
        partial(fused_stack_kernel, num_heads),
        out_shape=jax.ShapeDtypeStruct((Bsz, S_a, E), A_bse.dtype),
        grid_spec=grid_spec,
        compiler_params=pltpu.CompilerParams(
            dimension_semantics=("parallel", "arbitrary"),
            vmem_limit_bytes=_vmem_limit_bytes(Bb, S_a, S_b, E, F, H)),
    )(A_bse, B_bse,
      sp["wq_t"], sp["bq"], sp["wkv_t"], sp["bkv"], sp["wo_t"], sp["bo"],
      sp["ln1_g"], sp["ln1_b"], sp["w1_t"], sp["b1"], sp["w2_t"], sp["b2"],
      sp["ln2_g"], sp["ln2_b"])
    return jnp.transpose(out, (1, 0, 2))


# --------------------- parameter init & pure-JAX reference ---------------------

def init_layer_params(key, embed_dim, ff_dim):
    E, F = embed_dim, ff_dim
    ks = jax.random.split(key, 6)
    s = 0.1
    return dict(
        in_w=s * jax.random.normal(ks[0], (3 * E, E), jnp.float32),
        in_b=s * jax.random.normal(ks[1], (3, E), jnp.float32),
        out_w=s * jax.random.normal(ks[2], (E, E), jnp.float32),
        out_b=jnp.zeros((1, E), jnp.float32),
        ln1_g=jnp.ones((1, E), jnp.float32),
        ln1_b=jnp.zeros((1, E), jnp.float32),
        w1=s * jax.random.normal(ks[3], (F, E), jnp.float32),
        b1=s * jax.random.normal(ks[4], (1, F), jnp.float32),
        w2=s * jax.random.normal(ks[5], (E, F), jnp.float32),
        b2=jnp.zeros((1, E), jnp.float32),
        ln2_g=jnp.ones((1, E), jnp.float32),
        ln2_b=jnp.zeros((1, E), jnp.float32),
    )


def ref_layer(A, B, p, num_heads):
    hp = lax.Precision.HIGHEST
    E = A.shape[-1]
    D = E // num_heads
    S_a, Bsz, _ = A.shape
    S_b = B.shape[0]

    def proj(x, w, b):
        return jnp.einsum('sbe,fe->sbf', x, w, precision=hp) + b

    q = proj(A, p["in_w"][:E], p["in_b"][0])
    k = proj(B, p["in_w"][E:2 * E], p["in_b"][1])
    v = proj(B, p["in_w"][2 * E:], p["in_b"][2])
    qh = q.reshape(S_a, Bsz, num_heads, D)
    kh = k.reshape(S_b, Bsz, num_heads, D)
    vh = v.reshape(S_b, Bsz, num_heads, D)
    s = jnp.einsum('qbhd,kbhd->bhqk', qh, kh, precision=hp) / math.sqrt(D)
    attn = jax.nn.softmax(s, axis=-1)
    o = jnp.einsum('bhqk,kbhd->qbhd', attn, vh, precision=hp).reshape(S_a, Bsz, E)
    c = jnp.einsum('sbe,fe->sbf', o, p["out_w"], precision=hp) + p["out_b"][0]

    def ln(x, g, b):
        mu = x.mean(-1, keepdims=True)
        var = ((x - mu) ** 2).mean(-1, keepdims=True)
        return (x - mu) / jnp.sqrt(var + 1e-5) * g + b

    a1 = ln(A + c, p["ln1_g"][0], p["ln1_b"][0])
    h1 = jax.nn.relu(jnp.einsum('sbe,fe->sbf', a1, p["w1"], precision=hp) + p["b1"][0])
    f = jnp.einsum('sbf,ef->sbe', h1, p["w2"], precision=hp) + p["b2"][0]
    return ln(a1 + f, p["ln2_g"][0], p["ln2_b"][0])


def ref_stacked(A, B, layer_params, num_heads):
    for p in layer_params:
        A = ref_layer(A, B, p, num_heads)
    return A


if __name__ == "__main__":
    num_layers = 2
    embed_dim = 32
    num_heads = 4
    ff_dim = 64
    seq_a, seq_b, batch = 8, 8, 2

    root = jax.random.PRNGKey(0)
    k_a, k_b, k_p = jax.random.split(root, 3)
    A = jax.random.normal(k_a, (seq_a, batch, embed_dim), jnp.float32)
    B = jax.random.normal(k_b, (seq_b, batch, embed_dim), jnp.float32)
    layer_keys = jax.random.split(k_p, num_layers)
    layer_params = [init_layer_params(k, embed_dim, ff_dim) for k in layer_keys]

    out = stacked_cross_domain_attention(A, B, layer_params, num_heads)
    out = jax.block_until_ready(out)

    ref = jax.block_until_ready(ref_stacked(A, B, layer_params, num_heads))
    assert out.shape == (seq_a, batch, embed_dim)
    # Tolerance covers bf16 MXU operands + approx-reciprocal softmax (f32 accum).
    assert jnp.max(jnp.abs(out - ref)) < 2e-2, "mismatch vs pure-JAX reference"

    print("KERNEL_OK")
</pallas_src>

<mosaic_0001>
module attributes {stable_mosaic.version = 11 : i64} {
  func.func @fused_stack_kernel(%arg0: i32, %arg1: i32, %arg2: memref<1x8x32xf32, #tpu.memory_space<vmem>>, %arg3: memref<1x8x32xf32, #tpu.memory_space<vmem>>, %arg4: memref<1x32x32xbf16, #tpu.memory_space<vmem>>, %arg5: memref<1x1x32xf32, #tpu.memory_space<vmem>>, %arg6: memref<1x32x64xbf16, #tpu.memory_space<vmem>>, %arg7: memref<1x1x64xf32, #tpu.memory_space<vmem>>, %arg8: memref<1x32x32xbf16, #tpu.memory_space<vmem>>, %arg9: memref<1x1x32xf32, #tpu.memory_space<vmem>>, %arg10: memref<1x1x32xf32, #tpu.memory_space<vmem>>, %arg11: memref<1x1x32xf32, #tpu.memory_space<vmem>>, %arg12: memref<1x32x64xbf16, #tpu.memory_space<vmem>>, %arg13: memref<1x1x64xf32, #tpu.memory_space<vmem>>, %arg14: memref<1x64x32xbf16, #tpu.memory_space<vmem>>, %arg15: memref<1x1x32xf32, #tpu.memory_space<vmem>>, %arg16: memref<1x1x32xf32, #tpu.memory_space<vmem>>, %arg17: memref<1x1x32xf32, #tpu.memory_space<vmem>>, %arg18: memref<1x8x32xf32, #tpu.memory_space<vmem>>, %arg19: memref<1x8x32xf32, #tpu.memory_space<vmem>>) attributes {dimension_semantics = [#tpu.dimension_semantics<parallel>, #tpu.dimension_semantics<arbitrary>], iteration_bounds = array<i64: 2, 2>, scalar_prefetch = 0 : i64, scratch_operands = 1 : i64, tpu.core_type = #tpu.core_type<tc>, window_params = [{transform_indices = @transform_0, window_bounds = array<i64: 1, 8, 32>}, {transform_indices = @transform_1, window_bounds = array<i64: 1, 8, 32>}, {transform_indices = @transform_2, window_bounds = array<i64: 1, 32, 32>}, {transform_indices = @transform_3, window_bounds = array<i64: 1, 1, 32>}, {transform_indices = @transform_4, window_bounds = array<i64: 1, 32, 64>}, {transform_indices = @transform_5, window_bounds = array<i64: 1, 1, 64>}, {transform_indices = @transform_6, window_bounds = array<i64: 1, 32, 32>}, {transform_indices = @transform_7, window_bounds = array<i64: 1, 1, 32>}, {transform_indices = @transform_8, window_bounds = array<i64: 1, 1, 32>}, {transform_indices = @transform_9, window_bounds = array<i64: 1, 1, 32>}, {transform_indices = @transform_10, window_bounds = array<i64: 1, 32, 64>}, {transform_indices = @transform_11, window_bounds = array<i64: 1, 1, 64>}, {transform_indices = @transform_12, window_bounds = array<i64: 1, 64, 32>}, {transform_indices = @transform_13, window_bounds = array<i64: 1, 1, 32>}, {transform_indices = @transform_14, window_bounds = array<i64: 1, 1, 32>}, {transform_indices = @transform_15, window_bounds = array<i64: 1, 1, 32>}, {transform_indices = @transform_16, window_bounds = array<i64: 1, 8, 32>}]} {
    %c0_i32 = arith.constant 0 : i32
    %0 = arith.cmpi eq, %arg1, %c0_i32 : i32
    %1 = arith.extui %0 : i1 to i32
    %c0_i32_0 = arith.constant 0 : i32
    %2 = arith.cmpi ne, %1, %c0_i32_0 : i32
    scf.if %2 {
      %c0_71 = arith.constant 0 : index
      %c0_72 = arith.constant 0 : index
      %c0_73 = arith.constant 0 : index
      %134 = vector.load %arg2[%c0_71, %c0_72, %c0_73] : memref<1x8x32xf32, #tpu.memory_space<vmem>>, vector<1x8x32xf32>
      %c0_74 = arith.constant 0 : index
      %c0_75 = arith.constant 0 : index
      %c0_76 = arith.constant 0 : index
      %135 = vector.load %arg19[%c0_74, %c0_75, %c0_76] : memref<1x8x32xf32, #tpu.memory_space<vmem>>, vector<1x8x32xf32>
      tpu.vector_store %arg19[%c0_74, %c0_75, %c0_76], %134 {strides = array<i32>} : memref<1x8x32xf32, #tpu.memory_space<vmem>>, vector<1x8x32xf32>,
    } else {
    }
    %c0 = arith.constant 0 : index
    %c0_1 = arith.constant 0 : index
    %c0_2 = arith.constant 0 : index
    %3 = vector.load %arg19[%c0, %c0_1, %c0_2] : memref<1x8x32xf32, #tpu.memory_space<vmem>>, vector<1x8x32xf32>
    %4 = vector.shape_cast %3 : vector<1x8x32xf32> to vector<8x32xf32>
    %c0_3 = arith.constant 0 : index
    %c0_4 = arith.constant 0 : index
    %c0_5 = arith.constant 0 : index
    %5 = vector.load %arg3[%c0_3, %c0_4, %c0_5] : memref<1x8x32xf32, #tpu.memory_space<vmem>>, vector<1x8x32xf32>
    %6 = vector.shape_cast %5 : vector<1x8x32xf32> to vector<8x32xf32>
    %7 = arith.truncf %4 : vector<8x32xf32> to vector<8x32xbf16>
    %c0_6 = arith.constant 0 : index
    %c0_7 = arith.constant 0 : index
    %c0_8 = arith.constant 0 : index
    %8 = vector.load %arg4[%c0_6, %c0_7, %c0_8] : memref<1x32x32xbf16, #tpu.memory_space<vmem>>, vector<1x32x32xbf16>
    %9 = vector.shape_cast %8 : vector<1x32x32xbf16> to vector<32x32xbf16>
    %cst = arith.constant dense<0.000000e+00> : vector<8x32xf32>
    %10 = tpu.matmul %7, %9, %cst {dimension_numbers = #tpu.dot_dimension_numbers<[1], [0], [0], [1], [0, 0, 1, 1], [], []>} : vector<8x32xbf16>, vector<32x32xbf16>, vector<8x32xf32> -> vector<8x32xf32>
    %c0_9 = arith.constant 0 : index
    %c0_10 = arith.constant 0 : index
    %c0_11 = arith.constant 0 : index
    %11 = vector.load %arg5[%c0_9, %c0_10, %c0_11] : memref<1x1x32xf32, #tpu.memory_space<vmem>>, vector<1x1x32xf32>
    %12 = vector.shape_cast %11 : vector<1x1x32xf32> to vector<1x32xf32>
    %13 = vector.broadcast %12 : vector<1x32xf32> to vector<8x32xf32>
    %14 = arith.addf %10, %13 : vector<8x32xf32>
    %15 = arith.truncf %6 : vector<8x32xf32> to vector<8x32xbf16>
    %c0_12 = arith.constant 0 : index
    %c0_13 = arith.constant 0 : index
    %c0_14 = arith.constant 0 : index
    %16 = vector.load %arg6[%c0_12, %c0_13, %c0_14] : memref<1x32x64xbf16, #tpu.memory_space<vmem>>, vector<1x32x64xbf16>
    %17 = vector.shape_cast %16 : vector<1x32x64xbf16> to vector<32x64xbf16>
    %cst_15 = arith.constant dense<0.000000e+00> : vector<8x64xf32>
    %18 = tpu.matmul %15, %17, %cst_15 {dimension_numbers = #tpu.dot_dimension_numbers<[1], [0], [0], [1], [0, 0, 1, 1], [], []>} : vector<8x32xbf16>, vector<32x64xbf16>, vector<8x64xf32> -> vector<8x64xf32>
    %c0_16 = arith.constant 0 : index
    %c0_17 = arith.constant 0 : index
    %c0_18 = arith.constant 0 : index
    %19 = vector.load %arg7[%c0_16, %c0_17, %c0_18] : memref<1x1x64xf32, #tpu.memory_space<vmem>>, vector<1x1x64xf32>
    %20 = vector.shape_cast %19 : vector<1x1x64xf32> to vector<1x64xf32>
    %21 = vector.broadcast %20 : vector<1x64xf32> to vector<8x64xf32>
    %22 = arith.addf %18, %21 : vector<8x64xf32>
    %23 = vector.extract_strided_slice %22 {offsets = [0, 0], sizes = [8, 32], strides = [1, 1]} : vector<8x64xf32> to vector<8x32xf32>
    %24 = vector.extract_strided_slice %22 {offsets = [0, 32], sizes = [8, 32], strides = [1, 1]} : vector<8x64xf32> to vector<8x32xf32>
    %25 = vector.shape_cast %14 : vector<8x32xf32> to vector<8x4x8xf32>
    %26 = tpu.transpose %25, [1, 0, 2] : vector<8x4x8xf32> -> vector<4x8x8xf32>
    %27 = vector.shape_cast %23 : vector<8x32xf32> to vector<8x4x8xf32>
    %28 = tpu.transpose %27, [1, 0, 2] : vector<8x4x8xf32> -> vector<4x8x8xf32>
    %29 = vector.shape_cast %24 : vector<8x32xf32> to vector<8x4x8xf32>
    %30 = tpu.transpose %29, [1, 0, 2] : vector<8x4x8xf32> -> vector<4x8x8xf32>
    %31 = arith.truncf %26 : vector<4x8x8xf32> to vector<4x8x8xbf16>
    %32 = arith.truncf %28 : vector<4x8x8xf32> to vector<4x8x8xbf16>
    "tpu.trace_start"() <{level = 10 : i32, message = "hqd,hkd->hqk"}> : () -> ()
    %cst_19 = arith.constant dense<0.000000e+00> : vector<4x8x8xf32>
    %33 = tpu.matmul %31, %32, %cst_19 {dimension_numbers = #tpu.dot_dimension_numbers<[2], [2], [1], [1], [0, 0, 0, 1, 1, 1], [0], [0]>} : vector<4x8x8xbf16>, vector<4x8x8xbf16>, vector<4x8x8xf32> -> vector<4x8x8xf32>
    "tpu.trace_stop"() : () -> ()
    %cst_20 = arith.constant dense<0xFF800000> : vector<4x8xf32>
    %34 = vector.multi_reduction <maximumf>, %33, %cst_20 [2] : vector<4x8x8xf32> to vector<4x8xf32>
    %35 = vector.shape_cast %34 : vector<4x8xf32> to vector<4x8x1xf32>
    %36 = vector.broadcast %35 : vector<4x8x1xf32> to vector<4x8x8xf32>
    %37 = arith.subf %33, %36 : vector<4x8x8xf32>
    %38 = math.exp %37 : vector<4x8x8xf32>
    %cst_21 = arith.constant dense<0.000000e+00> : vector<4x8xf32>
    %39 = vector.multi_reduction <add>, %38, %cst_21 [2] : vector<4x8x8xf32> to vector<4x8xf32>
    %40 = vector.shape_cast %39 : vector<4x8xf32> to vector<4x8x1xf32>
    %41 = tpu.reciprocal %40 {approx = true} : vector<4x8x1xf32> -> vector<4x8x1xf32>
    %42 = vector.broadcast %41 : vector<4x8x1xf32> to vector<4x8x8xf32>
    %43 = arith.mulf %38, %42 : vector<4x8x8xf32>
    %44 = arith.truncf %43 : vector<4x8x8xf32> to vector<4x8x8xbf16>
    %45 = arith.truncf %30 : vector<4x8x8xf32> to vector<4x8x8xbf16>
    "tpu.trace_start"() <{level = 10 : i32, message = "hqk,hkd->hqd"}> : () -> ()
    %cst_22 = arith.constant dense<0.000000e+00> : vector<4x8x8xf32>
    %46 = tpu.matmul %44, %45, %cst_22 {dimension_numbers = #tpu.dot_dimension_numbers<[2], [1], [1], [2], [0, 0, 0, 1, 1, 2], [0], [0]>} : vector<4x8x8xbf16>, vector<4x8x8xbf16>, vector<4x8x8xf32> -> vector<4x8x8xf32>
    "tpu.trace_stop"() : () -> ()
    %47 = tpu.transpose %46, [1, 0, 2] : vector<4x8x8xf32> -> vector<8x4x8xf32>
    %48 = vector.shape_cast %47 : vector<8x4x8xf32> to vector<8x32xf32>
    %49 = arith.truncf %48 : vector<8x32xf32> to vector<8x32xbf16>
    %c0_23 = arith.constant 0 : index
    %c0_24 = arith.constant 0 : index
    %c0_25 = arith.constant 0 : index
    %50 = vector.load %arg8[%c0_23, %c0_24, %c0_25] : memref<1x32x32xbf16, #tpu.memory_space<vmem>>, vector<1x32x32xbf16>
    %51 = vector.shape_cast %50 : vector<1x32x32xbf16> to vector<32x32xbf16>
    %cst_26 = arith.constant dense<0.000000e+00> : vector<8x32xf32>
    %52 = tpu.matmul %49, %51, %cst_26 {dimension_numbers = #tpu.dot_dimension_numbers<[1], [0], [0], [1], [0, 0, 1, 1], [], []>} : vector<8x32xbf16>, vector<32x32xbf16>, vector<8x32xf32> -> vector<8x32xf32>
    %c0_27 = arith.constant 0 : index
    %c0_28 = arith.constant 0 : index
    %c0_29 = arith.constant 0 : index
    %53 = vector.load %arg9[%c0_27, %c0_28, %c0_29] : memref<1x1x32xf32, #tpu.memory_space<vmem>>, vector<1x1x32xf32>
    %54 = vector.shape_cast %53 : vector<1x1x32xf32> to vector<1x32xf32>
    %55 = vector.broadcast %54 : vector<1x32xf32> to vector<8x32xf32>
    %56 = arith.addf %52, %55 : vector<8x32xf32>
    %57 = arith.addf %4, %56 : vector<8x32xf32>
    %c0_30 = arith.constant 0 : index
    %c0_31 = arith.constant 0 : index
    %c0_32 = arith.constant 0 : index
    %58 = vector.load %arg10[%c0_30, %c0_31, %c0_32] : memref<1x1x32xf32, #tpu.memory_space<vmem>>, vector<1x1x32xf32>
    %59 = vector.shape_cast %58 : vector<1x1x32xf32> to vector<1x32xf32>
    %c0_33 = arith.constant 0 : index
    %c0_34 = arith.constant 0 : index
    %c0_35 = arith.constant 0 : index
    %60 = vector.load %arg11[%c0_33, %c0_34, %c0_35] : memref<1x1x32xf32, #tpu.memory_space<vmem>>, vector<1x1x32xf32>
    %61 = vector.shape_cast %60 : vector<1x1x32xf32> to vector<1x32xf32>
    %cst_36 = arith.constant dense<0.000000e+00> : vector<8xf32>
    %62 = vector.multi_reduction <add>, %57, %cst_36 [1] : vector<8x32xf32> to vector<8xf32>
    %63 = vector.shape_cast %62 : vector<8xf32> to vector<8x1xf32>
    %cst_37 = arith.constant 3.200000e+01 : f32
    %64 = vector.broadcast %cst_37 : f32 to vector<8x1xf32>
    %65 = arith.divf %63, %64 : vector<8x1xf32>
    %66 = vector.broadcast %65 : vector<8x1xf32> to vector<8x32xf32>
    %67 = arith.subf %57, %66 : vector<8x32xf32>
    %68 = arith.mulf %67, %67 : vector<8x32xf32>
    %cst_38 = arith.constant dense<0.000000e+00> : vector<8xf32>
    %69 = vector.multi_reduction <add>, %68, %cst_38 [1] : vector<8x32xf32> to vector<8xf32>
    %70 = vector.shape_cast %69 : vector<8xf32> to vector<8x1xf32>
    %cst_39 = arith.constant 3.200000e+01 : f32
    %71 = vector.broadcast %cst_39 : f32 to vector<8x1xf32>
    %72 = arith.divf %70, %71 : vector<8x1xf32>
    %73 = vector.broadcast %65 : vector<8x1xf32> to vector<8x32xf32>
    %74 = arith.subf %57, %73 : vector<8x32xf32>
    %cst_40 = arith.constant 9.99999974E-6 : f32
    %75 = vector.broadcast %cst_40 : f32 to vector<8x1xf32>
    %76 = arith.addf %72, %75 : vector<8x1xf32>
    %77 = math.rsqrt %76 : vector<8x1xf32>
    %78 = vector.broadcast %77 : vector<8x1xf32> to vector<8x32xf32>
    %79 = arith.mulf %74, %78 : vector<8x32xf32>
    %80 = vector.broadcast %59 : vector<1x32xf32> to vector<8x32xf32>
    %81 = arith.mulf %79, %80 : vector<8x32xf32>
    %82 = vector.broadcast %61 : vector<1x32xf32> to vector<8x32xf32>
    %83 = arith.addf %81, %82 : vector<8x32xf32>
    %84 = arith.truncf %83 : vector<8x32xf32> to vector<8x32xbf16>
    %c0_41 = arith.constant 0 : index
    %c0_42 = arith.constant 0 : index
    %c0_43 = arith.constant 0 : index
    %85 = vector.load %arg12[%c0_41, %c0_42, %c0_43] : memref<1x32x64xbf16, #tpu.memory_space<vmem>>, vector<1x32x64xbf16>
    %86 = vector.shape_cast %85 : vector<1x32x64xbf16> to vector<32x64xbf16>
    %cst_44 = arith.constant dense<0.000000e+00> : vector<8x64xf32>
    %87 = tpu.matmul %84, %86, %cst_44 {dimension_numbers = #tpu.dot_dimension_numbers<[1], [0], [0], [1], [0, 0, 1, 1], [], []>} : vector<8x32xbf16>, vector<32x64xbf16>, vector<8x64xf32> -> vector<8x64xf32>
    %c0_45 = arith.constant 0 : index
    %c0_46 = arith.constant 0 : index
    %c0_47 = arith.constant 0 : index
    %88 = vector.load %arg13[%c0_45, %c0_46, %c0_47] : memref<1x1x64xf32, #tpu.memory_space<vmem>>, vector<1x1x64xf32>
    %89 = vector.shape_cast %88 : vector<1x1x64xf32> to vector<1x64xf32>
    %90 = vector.broadcast %89 : vector<1x64xf32> to vector<8x64xf32>
    %91 = arith.addf %87, %90 : vector<8x64xf32>
    %cst_48 = arith.constant 0.000000e+00 : f32
    %92 = vector.broadcast %cst_48 : f32 to vector<8x64xf32>
    %93 = arith.maximumf %91, %92 : vector<8x64xf32>
    %94 = arith.truncf %93 : vector<8x64xf32> to vector<8x64xbf16>
    %c0_49 = arith.constant 0 : index
    %c0_50 = arith.constant 0 : index
    %c0_51 = arith.constant 0 : index
    %95 = vector.load %arg14[%c0_49, %c0_50, %c0_51] : memref<1x64x32xbf16, #tpu.memory_space<vmem>>, vector<1x64x32xbf16>
    %96 = vector.shape_cast %95 : vector<1x64x32xbf16> to vector<64x32xbf16>
    %cst_52 = arith.constant dense<0.000000e+00> : vector<8x32xf32>
    %97 = tpu.matmul %94, %96, %cst_52 {dimension_numbers = #tpu.dot_dimension_numbers<[1], [0], [0], [1], [0, 0, 1, 1], [], []>} : vector<8x64xbf16>, vector<64x32xbf16>, vector<8x32xf32> -> vector<8x32xf32>
    %c0_53 = arith.constant 0 : index
    %c0_54 = arith.constant 0 : index
    %c0_55 = arith.constant 0 : index
    %98 = vector.load %arg15[%c0_53, %c0_54, %c0_55] : memref<1x1x32xf32, #tpu.memory_space<vmem>>, vector<1x1x32xf32>
    %99 = vector.shape_cast %98 : vector<1x1x32xf32> to vector<1x32xf32>
    %100 = vector.broadcast %99 : vector<1x32xf32> to vector<8x32xf32>
    %101 = arith.addf %97, %100 : vector<8x32xf32>
    %102 = arith.addf %83, %101 : vector<8x32xf32>
    %c0_56 = arith.constant 0 : index
    %c0_57 = arith.constant 0 : index
    %c0_58 = arith.constant 0 : index
    %103 = vector.load %arg16[%c0_56, %c0_57, %c0_58] : memref<1x1x32xf32, #tpu.memory_space<vmem>>, vector<1x1x32xf32>
    %104 = vector.shape_cast %103 : vector<1x1x32xf32> to vector<1x32xf32>
    %c0_59 = arith.constant 0 : index
    %c0_60 = arith.constant 0 : index
    %c0_61 = arith.constant 0 : index
    %105 = vector.load %arg17[%c0_59, %c0_60, %c0_61] : memref<1x1x32xf32, #tpu.memory_space<vmem>>, vector<1x1x32xf32>
    %106 = vector.shape_cast %105 : vector<1x1x32xf32> to vector<1x32xf32>
    %cst_62 = arith.constant dense<0.000000e+00> : vector<8xf32>
    %107 = vector.multi_reduction <add>, %102, %cst_62 [1] : vector<8x32xf32> to vector<8xf32>
    %108 = vector.shape_cast %107 : vector<8xf32> to vector<8x1xf32>
    %cst_63 = arith.constant 3.200000e+01 : f32
    %109 = vector.broadcast %cst_63 : f32 to vector<8x1xf32>
    %110 = arith.divf %108, %109 : vector<8x1xf32>
    %111 = vector.broadcast %110 : vector<8x1xf32> to vector<8x32xf32>
    %112 = arith.subf %102, %111 : vector<8x32xf32>
    %113 = arith.mulf %112, %112 : vector<8x32xf32>
    %cst_64 = arith.constant dense<0.000000e+00> : vector<8xf32>
    %114 = vector.multi_reduction <add>, %113, %cst_64 [1] : vector<8x32xf32> to vector<8xf32>
    %115 = vector.shape_cast %114 : vector<8xf32> to vector<8x1xf32>
    %cst_65 = arith.constant 3.200000e+01 : f32
    %116 = vector.broadcast %cst_65 : f32 to vector<8x1xf32>
    %117 = arith.divf %115, %116 : vector<8x1xf32>
    %118 = vector.broadcast %110 : vector<8x1xf32> to vector<8x32xf32>
    %119 = arith.subf %102, %118 : vector<8x32xf32>
    %cst_66 = arith.constant 9.99999974E-6 : f32
    %120 = vector.broadcast %cst_66 : f32 to vector<8x1xf32>
    %121 = arith.addf %117, %120 : vector<8x1xf32>
    %122 = math.rsqrt %121 : vector<8x1xf32>
    %123 = vector.broadcast %122 : vector<8x1xf32> to vector<8x32xf32>
    %124 = arith.mulf %119, %123 : vector<8x32xf32>
    %125 = vector.broadcast %104 : vector<1x32xf32> to vector<8x32xf32>
    %126 = arith.mulf %124, %125 : vector<8x32xf32>
    %127 = vector.broadcast %106 : vector<1x32xf32> to vector<8x32xf32>
    %128 = arith.addf %126, %127 : vector<8x32xf32>
    %129 = vector.shape_cast %128 : vector<8x32xf32> to vector<1x8x32xf32>
    %c0_67 = arith.constant 0 : index
    %c0_68 = arith.constant 0 : index
    %c0_69 = arith.constant 0 : index
    %130 = vector.load %arg19[%c0_67, %c0_68, %c0_69] : memref<1x8x32xf32, #tpu.memory_space<vmem>>, vector<1x8x32xf32>
    tpu.vector_store %arg19[%c0_67, %c0_68, %c0_69], %129 {strides = array<i32>} : memref<1x8x32xf32, #tpu.memory_space<vmem>>, vector<1x8x32xf32>,
    %c1_i32 = arith.constant 1 : i32
    %131 = arith.cmpi eq, %arg1, %c1_i32 : i32
    %132 = arith.extui %131 : i1 to i32
    %c0_i32_70 = arith.constant 0 : i32
    %133 = arith.cmpi ne, %132, %c0_i32_70 : i32
    scf.if %133 {
      %c0_71 = arith.constant 0 : index
      %c0_72 = arith.constant 0 : index
      %c0_73 = arith.constant 0 : index
      %134 = vector.load %arg19[%c0_71, %c0_72, %c0_73] : memref<1x8x32xf32, #tpu.memory_space<vmem>>, vector<1x8x32xf32>
      %c0_74 = arith.constant 0 : index
      %c0_75 = arith.constant 0 : index
      %c0_76 = arith.constant 0 : index
      %135 = vector.load %arg18[%c0_74, %c0_75, %c0_76] : memref<1x8x32xf32, #tpu.memory_space<vmem>>, vector<1x8x32xf32>
      tpu.vector_store %arg18[%c0_74, %c0_75, %c0_76], %134 {strides = array<i32>} : memref<1x8x32xf32, #tpu.memory_space<vmem>>, vector<1x8x32xf32>,
    } else {
    }
    return
  }
  func.func @transform_0(%arg0: i32, %arg1: i32) -> (i32, i32, i32) {
    %c0_i32 = arith.constant 0 : i32
    %c0_i32_0 = arith.constant 0 : i32
    %c0_i32_1 = arith.constant 0 : i32
    return %arg0, %c0_i32, %c0_i32_0 : i32, i32, i32
  }
  func.func @transform_1(%arg0: i32, %arg1: i32) -> (i32, i32, i32) {
    %c0_i32 = arith.constant 0 : i32
    %c0_i32_0 = arith.constant 0 : i32
    %c0_i32_1 = arith.constant 0 : i32
    return %arg0, %c0_i32, %c0_i32_0 : i32, i32, i32
  }
  func.func @transform_2(%arg0: i32, %arg1: i32) -> (i32, i32, i32) {
    %c0_i32 = arith.constant 0 : i32
    %c0_i32_0 = arith.constant 0 : i32
    %c0_i32_1 = arith.constant 0 : i32
    return %arg1, %c0_i32, %c0_i32_0 : i32, i32, i32
  }
  func.func @transform_3(%arg0: i32, %arg1: i32) -> (i32, i32, i32) {
    %c0_i32 = arith.constant 0 : i32
    %c0_i32_0 = arith.constant 0 : i32
    %c0_i32_1 = arith.constant 0 : i32
    return %arg1, %c0_i32, %c0_i32_0 : i32, i32, i32
  }
  func.func @transform_4(%arg0: i32, %arg1: i32) -> (i32, i32, i32) {
    %c0_i32 = arith.constant 0 : i32
    %c0_i32_0 = arith.constant 0 : i32
    %c0_i32_1 = arith.constant 0 : i32
    return %arg1, %c0_i32, %c0_i32_0 : i32, i32, i32
  }
  func.func @transform_5(%arg0: i32, %arg1: i32) -> (i32, i32, i32) {
    %c0_i32 = arith.constant 0 : i32
    %c0_i32_0 = arith.constant 0 : i32
    %c0_i32_1 = arith.constant 0 : i32
    return %arg1, %c0_i32, %c0_i32_0 : i32, i32, i32
  }
  func.func @transform_6(%arg0: i32, %arg1: i32) -> (i32, i32, i32) {
    %c0_i32 = arith.constant 0 : i32
    %c0_i32_0 = arith.constant 0 : i32
    %c0_i32_1 = arith.constant 0 : i32
    return %arg1, %c0_i32, %c0_i32_0 : i32, i32, i32
  }
  func.func @transform_7(%arg0: i32, %arg1: i32) -> (i32, i32, i32) {
    %c0_i32 = arith.constant 0 : i32
    %c0_i32_0 = arith.constant 0 : i32
    %c0_i32_1 = arith.constant 0 : i32
    return %arg1, %c0_i32, %c0_i32_0 : i32, i32, i32
  }
  func.func @transform_8(%arg0: i32, %arg1: i32) -> (i32, i32, i32) {
    %c0_i32 = arith.constant 0 : i32
    %c0_i32_0 = arith.constant 0 : i32
    %c0_i32_1 = arith.constant 0 : i32
    return %arg1, %c0_i32, %c0_i32_0 : i32, i32, i32
  }
  func.func @transform_9(%arg0: i32, %arg1: i32) -> (i32, i32, i32) {
    %c0_i32 = arith.constant 0 : i32
    %c0_i32_0 = arith.constant 0 : i32
    %c0_i32_1 = arith.constant 0 : i32
    return %arg1, %c0_i32, %c0_i32_0 : i32, i32, i32
  }
  func.func @transform_10(%arg0: i32, %arg1: i32) -> (i32, i32, i32) {
    %c0_i32 = arith.constant 0 : i32
    %c0_i32_0 = arith.constant 0 : i32
    %c0_i32_1 = arith.constant 0 : i32
    return %arg1, %c0_i32, %c0_i32_0 : i32, i32, i32
  }
  func.func @transform_11(%arg0: i32, %arg1: i32) -> (i32, i32, i32) {
    %c0_i32 = arith.constant 0 : i32
    %c0_i32_0 = arith.constant 0 : i32
    %c0_i32_1 = arith.constant 0 : i32
    return %arg1, %c0_i32, %c0_i32_0 : i32, i32, i32
  }
  func.func @transform_12(%arg0: i32, %arg1: i32) -> (i32, i32, i32) {
    %c0_i32 = arith.constant 0 : i32
    %c0_i32_0 = arith.constant 0 : i32
    %c0_i32_1 = arith.constant 0 : i32
    return %arg1, %c0_i32, %c0_i32_0 : i32, i32, i32
  }
  func.func @transform_13(%arg0: i32, %arg1: i32) -> (i32, i32, i32) {
    %c0_i32 = arith.constant 0 : i32
    %c0_i32_0 = arith.constant 0 : i32
    %c0_i32_1 = arith.constant 0 : i32
    return %arg1, %c0_i32, %c0_i32_0 : i32, i32, i32
  }
  func.func @transform_14(%arg0: i32, %arg1: i32) -> (i32, i32, i32) {
    %c0_i32 = arith.constant 0 : i32
    %c0_i32_0 = arith.constant 0 : i32
    %c0_i32_1 = arith.constant 0 : i32
    return %arg1, %c0_i32, %c0_i32_0 : i32, i32, i32
  }
  func.func @transform_15(%arg0: i32, %arg1: i32) -> (i32, i32, i32) {
    %c0_i32 = arith.constant 0 : i32
    %c0_i32_0 = arith.constant 0 : i32
    %c0_i32_1 = arith.constant 0 : i32
    return %arg1, %c0_i32, %c0_i32_0 : i32, i32, i32
  }
  func.func @transform_16(%arg0: i32, %arg1: i32) -> (i32, i32, i32) {
    %c0_i32 = arith.constant 0 : i32
    %c0_i32_0 = arith.constant 0 : i32
    %c0_i32_1 = arith.constant 0 : i32
    return %arg0, %c0_i32, %c0_i32_0 : i32, i32, i32
  }
}

</mosaic_0001>

<llo_original>
// kernel: tpu_custom_call.1
$region0: #{tpu_custom_call.1}
  #allocation0 [shape = 'u32[]', space=smem, size = 0x4, offset = 0x4, fixed_abs, tag = 'smem constant byte address 0x4 - core index']
  #allocation1 [shape = 'u32[144,128]{1,0:T(1,128)}', space=vmem, size = 0x12000, scoped, tag = 'internal scratch']
  #allocation2 [shape = 'f32[1,8,32]{2,1,0:T(8,128)}', space=vmem, size = 0x1000, scoped, tag = 'scratch operand']
  %s0 = inlined_call_operand.hbm [shape: f32[2,8,32], index: 0, kind: input, shape index: {}]
  %s1 = inlined_call_operand.hbm [shape: f32[2,8,32], index: 1, kind: input, shape index: {}]
  %s2 = inlined_call_operand.vmem [shape: bf16[2,32,32], index: 2, kind: input, shape index: {}]
  %s3 = inlined_call_operand.vmem [shape: f32[2,1,32], index: 3, kind: input, shape index: {}]
  %s4 = inlined_call_operand.vmem [shape: bf16[2,32,64], index: 4, kind: input, shape index: {}]
  %s5 = inlined_call_operand.vmem [shape: f32[2,1,64], index: 5, kind: input, shape index: {}]
  %s6 = inlined_call_operand.vmem [shape: bf16[2,32,32], index: 6, kind: input, shape index: {}]
  %s7 = inlined_call_operand.vmem [shape: f32[2,1,32], index: 7, kind: input, shape index: {}]
  %s8 = inlined_call_operand.vmem [shape: f32[2,1,32], index: 8, kind: input, shape index: {}]
  %s9 = inlined_call_operand.vmem [shape: f32[2,1,32], index: 9, kind: input, shape index: {}]
  %s10 = inlined_call_operand.hbm [shape: bf16[2,32,64], index: 10, kind: input, shape index: {}]
  %s11 = inlined_call_operand.vmem [shape: f32[2,1,64], index: 11, kind: input, shape index: {}]
  %s12 = inlined_call_operand.vmem [shape: bf16[2,64,32], index: 12, kind: input, shape index: {}]
  %s13 = inlined_call_operand.vmem [shape: f32[2,1,32], index: 13, kind: input, shape index: {}]
  %s14 = inlined_call_operand.vmem [shape: f32[2,1,32], index: 14, kind: input, shape index: {}]
  %s15 = inlined_call_operand.vmem [shape: f32[2,1,32], index: 15, kind: input, shape index: {}]
  %s16 = inlined_call_operand.hbm [shape: f32[2,8,32], index: 16, kind: output, shape index: {}]
  %s17 = sld [smem:[#allocation0]]
  $region117: #{tpu_custom_call.1} parent=0
    _
  %s19 = ssub.s32 1, %s17
  %s20 = scalar_select 0, %s19, %s17
  $region1: #{tpu_custom_call.1} parent=0
    #allocation3 [shape = 'u8[8192]{0}', space=vmem, size = 0x2000, scoped, tag = 'input window, operand 0']
    #allocation4 [shape = 's32[2]{0}', space=sflag, size = 0x8, scoped, tag = 'scoped memory for tpu_custom_call.1']
    #allocation5 [shape = 's32[2]{0}', space=sflag, size = 0x8, scoped, tag = 'scoped memory for tpu_custom_call.1']
    #allocation6 [shape = 'u8[8192]{0}', space=vmem, size = 0x2000, scoped, tag = 'input window, operand 1']
    #allocation7 [shape = 's32[2]{0}', space=sflag, size = 0x8, scoped, tag = 'scoped memory for tpu_custom_call.1']
    #allocation8 [shape = 'u8[16384]{0}', space=vmem, size = 0x4000, scoped, tag = 'input window, operand 10']
    #allocation9 [shape = 'u8[8192]{0}', space=vmem, size = 0x2000, scoped, tag = 'output window, operand 0']
    %21 = vsyncpa [#allocation4], 0
    %s22 = scalar_lea.sflag [#allocation4], 1
    %23 = vsyncpa %s22, 0
    %24 = vsyncpa [#allocation7], 0
    %s25 = scalar_lea.sflag [#allocation7], 1
    %26 = vsyncpa %s25, 0
    %27 = vsyncpa [#allocation5], 0
    %s28 = scalar_lea.sflag [#allocation5], 1
    %29 = vsyncpa %s28, 0
    loop: start=0, step=1, limit=6
    $region2: #{tpu_custom_call.1} parent=1 // loop_pre_header
      _
    $region3: #{tpu_custom_call.1} parent=1 // loop_header
      %s31 = sphi 0, %s35
      %p32 = scmp.ge.s32.totalorder %s31, 6
      %s38 = sphi 0, %s50
      %s39 = sphi 0, %s46
      %s40 = sphi 0, %s38
      %s41 = sphi 0, %s39
      %s42 = sphi 0, %s40
      %s43 = sphi 0, %s41
      %s53 = sphi 0, %s55
      %s56 = sphi 0, %s53
      %s57 = sphi 0, %s56
      %s73 = sphi 0, %s57
      %s79 = sphi 0, %s81
      %s82 = sphi 0, %s79
      %s83 = sphi 0, %s82
      %s99 = sphi 0, %s83
      %s105 = sphi 0, %s107
      %s108 = sphi 0, %s105
      %s109 = sphi 0, %s108
      %s125 = sphi 0, %s109
      %s131 = sphi 0, %s133
      %s134 = sphi 0, %s131
      %s135 = sphi 0, %s134
      %s151 = sphi 0, %s135
      %s157 = sphi 0, %s159
      %s160 = sphi 0, %s157
      %s161 = sphi 0, %s160
      %s177 = sphi 0, %s161
      %s183 = sphi 0, %s185
      %s186 = sphi 0, %s183
      %s187 = sphi 0, %s186
      %s203 = sphi 0, %s187
      %s209 = sphi 0, %s211
      %s212 = sphi 0, %s209
      %s213 = sphi 0, %s212
      %s229 = sphi 0, %s213
      %s235 = sphi 0, %s237
      %s238 = sphi 0, %s235
      %s239 = sphi 0, %s238
      %s255 = sphi 0, %s239
      %s261 = sphi 0, %s263
      %s264 = sphi 0, %s261
      %s265 = sphi 0, %s264
      %s281 = sphi 0, %s265
      %s287 = sphi 0, %s289
      %s290 = sphi 0, %s287
      %s291 = sphi 0, %s290
      %s307 = sphi 0, %s291
      %s313 = sphi 0, %s315
      %s316 = sphi 0, %s313
      %s317 = sphi 0, %s316
      %s333 = sphi 0, %s317
      %s339 = sphi 0, %s341
      %s342 = sphi 0, %s339
      %s343 = sphi 0, %s342
      %s359 = sphi 0, %s343
      %s365 = sphi 0, %s367
      %s368 = sphi 0, %s365
      %s369 = sphi 0, %s368
      %s385 = sphi 0, %s369
      %s391 = sphi 0, %s393
      %s394 = sphi 0, %s391
      %s395 = sphi 0, %s394
      %s411 = sphi 0, %s395
      %s417 = sphi 0, %s419
      %s420 = sphi 0, %s417
      %s421 = sphi 0, %s420
      %s437 = sphi 0, %s421
      %s443 = sphi 0, %s445
      %s446 = sphi 0, %s443
      %s447 = sphi 0, %s446
      %s463 = sphi 0, %s447
      %s469 = sphi 0, %s471
      %s472 = sphi 0, %s469
      %s473 = sphi 0, %s472
      %s489 = sphi 0, %s473
    $region4: #{tpu_custom_call.1} parent=1 // loop_header_branch
      %34 = sbr.rel (%p32) target = $region8
    $region5: #{tpu_custom_call.1} parent=1 // loop_body
      %s36 = ssub.s32 %s31, 1
      %s37 = ssub.s32 %s31, 2
      %s44 = sadd.s32 1, %s39
      %p45 = scmp.ge.s32.totalorder %s44, 2
      %s46 = scalar_select %p45, 0, %s44
      %s47 = sadd.s32 1, %s38
      %s48 = scalar_select %p45, %s47, %s38
      %p49 = scmp.ge.s32.totalorder %s48, 2
      %s50 = scalar_select %p49, 0, %s48
      %s51 = ssub.s32 %s38, %s50
      %p52 = scmp.eq.s32.totalorder %s51, 0
      %s54 = sadd.s32 %s53, 1
      %s55 = scalar_select %p52, %s53, %s54
      %p58 = pneg %p52
      %p59 = scmp.eq.s32.totalorder %s31, 3
      %p60 = por %p58, %p59
      %p61 = scmp.ne.s32.totalorder %s53, %s56
      %p62 = scmp.eq.s32.totalorder %s31, 0
      %p63 = por %p61, %p62
      %p64 = scmp.ne.s32.totalorder %s53, %s56
      %p65 = scmp.eq.s32.totalorder %s36, 3
      %p66 = por %p64, %p65
      %p67 = scmp.ne.s32.totalorder %s56, %s57
      %p68 = scmp.eq.s32.totalorder %s36, 0
      %p69 = por %p67, %p68
      %p70 = scmp.ne.s32.totalorder %s56, %s57
      %p71 = scmp.eq.s32.totalorder %s37, 3
      %p72 = por %p70, %p71
      %p74 = scmp.ne.s32.totalorder %s57, %s73
      %p75 = scmp.eq.s32.totalorder %s37, 0
      %p76 = por %p74, %p75
      %s77 = ssub.s32 %s38, %s50
      %p78 = scmp.eq.s32.totalorder %s77, 0
      %s80 = sadd.s32 %s79, 1
      %s81 = scalar_select %p78, %s79, %s80
      %p84 = pneg %p78
      %p85 = scmp.eq.s32.totalorder %s31, 3
      %p86 = por %p84, %p85
      %p87 = scmp.ne.s32.totalorder %s79, %s82
      %p88 = scmp.eq.s32.totalorder %s31, 0
      %p89 = por %p87, %p88
      %p90 = scmp.ne.s32.totalorder %s79, %s82
      %p91 = scmp.eq.s32.totalorder %s36, 3
      %p92 = por %p90, %p91
      %p93 = scmp.ne.s32.totalorder %s82, %s83
      %p94 = scmp.eq.s32.totalorder %s36, 0
      %p95 = por %p93, %p94
      %p96 = scmp.ne.s32.totalorder %s82, %s83
      %p97 = scmp.eq.s32.totalorder %s37, 3
      %p98 = por %p96, %p97
      %p100 = scmp.ne.s32.totalorder %s83, %s99
      %p101 = scmp.eq.s32.totalorder %s37, 0
      %p102 = por %p100, %p101
      %s103 = ssub.s32 %s39, %s46
      %p104 = scmp.eq.s32.totalorder %s103, 0
      %s106 = sadd.s32 %s105, 1
      %s107 = scalar_select %p104, %s105, %s106
      %p110 = pneg %p104
      %p111 = scmp.eq.s32.totalorder %s31, 3
      %p112 = por %p110, %p111
      %p113 = scmp.ne.s32.totalorder %s105, %s108
      %p114 = scmp.eq.s32.totalorder %s31, 0
      %p115 = por %p113, %p114
      %p116 = scmp.ne.s32.totalorder %s105, %s108
      %p117 = scmp.eq.s32.totalorder %s36, 3
      %p118 = por %p116, %p117
      %p119 = scmp.ne.s32.totalorder %s108, %s109
      %p120 = scmp.eq.s32.totalorder %s36, 0
      %p121 = por %p119, %p120
      %p122 = scmp.ne.s32.totalorder %s108, %s109
      %p123 = scmp.eq.s32.totalorder %s37, 3
      %p124 = por %p122, %p123
      %p126 = scmp.ne.s32.totalorder %s109, %s125
      %p127 = scmp.eq.s32.totalorder %s37, 0
      %p128 = por %p126, %p127
      %s129 = ssub.s32 %s39, %s46
      %p130 = scmp.eq.s32.totalorder %s129, 0
      %s132 = sadd.s32 %s131, 1
      %s133 = scalar_select %p130, %s131, %s132
      %p136 = pneg %p130
      %p137 = scmp.eq.s32.totalorder %s31, 3
      %p138 = por %p136, %p137
      %p139 = scmp.ne.s32.totalorder %s131, %s134
      %p140 = scmp.eq.s32.totalorder %s31, 0
      %p141 = por %p139, %p140
      %p142 = scmp.ne.s32.totalorder %s131, %s134
      %p143 = scmp.eq.s32.totalorder %s36, 3
      %p144 = por %p142, %p143
      %p145 = scmp.ne.s32.totalorder %s134, %s135
      %p146 = scmp.eq.s32.totalorder %s36, 0
      %p147 = por %p145, %p146
      %p148 = scmp.ne.s32.totalorder %s134, %s135
      %p149 = scmp.eq.s32.totalorder %s37, 3
      %p150 = por %p148, %p149
      %p152 = scmp.ne.s32.totalorder %s135, %s151
      %p153 = scmp.eq.s32.totalorder %s37, 0
      %p154 = por %p152, %p153
      %s155 = ssub.s32 %s39, %s46
      %p156 = scmp.eq.s32.totalorder %s155, 0
      %s158 = sadd.s32 %s157, 1
      %s159 = scalar_select %p156, %s157, %s158
      %p162 = pneg %p156
      %p163 = scmp.eq.s32.totalorder %s31, 3
      %p164 = por %p162, %p163
      %p165 = scmp.ne.s32.totalorder %s157, %s160
      %p166 = scmp.eq.s32.totalorder %s31, 0
      %p167 = por %p165, %p166
      %p168 = scmp.ne.s32.totalorder %s157, %s160
      %p169 = scmp.eq.s32.totalorder %s36, 3
      %p170 = por %p168, %p169
      %p171 = scmp.ne.s32.totalorder %s160, %s161
      %p172 = scmp.eq.s32.totalorder %s36, 0
      %p173 = por %p171, %p172
      %p174 = scmp.ne.s32.totalorder %s160, %s161
      %p175 = scmp.eq.s32.totalorder %s37, 3
      %p176 = por %p174, %p175
      %p178 = scmp.ne.s32.totalorder %s161, %s177
      %p179 = scmp.eq.s32.totalorder %s37, 0
      %p180 = por %p178, %p179
      %s181 = ssub.s32 %s39, %s46
      %p182 = scmp.eq.s32.totalorder %s181, 0
      %s184 = sadd.s32 %s183, 1
      %s185 = scalar_select %p182, %s183, %s184
      %p188 = pneg %p182
      %p189 = scmp.eq.s32.totalorder %s31, 3
      %p190 = por %p188, %p189
      %p191 = scmp.ne.s32.totalorder %s183, %s186
      %p192 = scmp.eq.s32.totalorder %s31, 0
      %p193 = por %p191, %p192
      %p194 = scmp.ne.s32.totalorder %s183, %s186
      %p195 = scmp.eq.s32.totalorder %s36, 3
      %p196 = por %p194, %p195
      %p197 = scmp.ne.s32.totalorder %s186, %s187
      %p198 = scmp.eq.s32.totalorder %s36, 0
      %p199 = por %p197, %p198
      %p200 = scmp.ne.s32.totalorder %s186, %s187
      %p201 = scmp.eq.s32.totalorder %s37, 3
      %p202 = por %p200, %p201
      %p204 = scmp.ne.s32.totalorder %s187, %s203
      %p205 = scmp.eq.s32.totalorder %s37, 0
      %p206 = por %p204, %p205
      %s207 = ssub.s32 %s39, %s46
      %p208 = scmp.eq.s32.totalorder %s207, 0
      %s210 = sadd.s32 %s209, 1
      %s211 = scalar_select %p208, %s209, %s210
      %p214 = pneg %p208
      %p215 = scmp.eq.s32.totalorder %s31, 3
      %p216 = por %p214, %p215
      %p217 = scmp.ne.s32.totalorder %s209, %s212
      %p218 = scmp.eq.s32.totalorder %s31, 0
      %p219 = por %p217, %p218
      %p220 = scmp.ne.s32.totalorder %s209, %s212
      %p221 = scmp.eq.s32.totalorder %s36, 3
      %p222 = por %p220, %p221
      %p223 = scmp.ne.s32.totalorder %s212, %s213
      %p224 = scmp.eq.s32.totalorder %s36, 0
      %p225 = por %p223, %p224
      %p226 = scmp.ne.s32.totalorder %s212, %s213
      %p227 = scmp.eq.s32.totalorder %s37, 3
      %p228 = por %p226, %p227
      %p230 = scmp.ne.s32.totalorder %s213, %s229
      %p231 = scmp.eq.s32.totalorder %s37, 0
      %p232 = por %p230, %p231
      %s233 = ssub.s32 %s39, %s46
      %p234 = scmp.eq.s32.totalorder %s233, 0
      %s236 = sadd.s32 %s235, 1
      %s237 = scalar_select %p234, %s235, %s236
      %p240 = pneg %p234
      %p241 = scmp.eq.s32.totalorder %s31, 3
      %p242 = por %p240, %p241
      %p243 = scmp.ne.s32.totalorder %s235, %s238
      %p244 = scmp.eq.s32.totalorder %s31, 0
      %p245 = por %p243, %p244
      %p246 = scmp.ne.s32.totalorder %s235, %s238
      %p247 = scmp.eq.s32.totalorder %s36, 3
      %p248 = por %p246, %p247
      %p249 = scmp.ne.s32.totalorder %s238, %s239
      %p250 = scmp.eq.s32.totalorder %s36, 0
      %p251 = por %p249, %p250
      %p252 = scmp.ne.s32.totalorder %s238, %s239
      %p253 = scmp.eq.s32.totalorder %s37, 3
      %p254 = por %p252, %p253
      %p256 = scmp.ne.s32.totalorder %s239, %s255
      %p257 = scmp.eq.s32.totalorder %s37, 0
      %p258 = por %p256, %p257
      %s259 = ssub.s32 %s39, %s46
      %p260 = scmp.eq.s32.totalorder %s259, 0
      %s262 = sadd.s32 %s261, 1
      %s263 = scalar_select %p260, %s261, %s262
      %p266 = pneg %p260
      %p267 = scmp.eq.s32.totalorder %s31, 3
      %p268 = por %p266, %p267
      %p269 = scmp.ne.s32.totalorder %s261, %s264
      %p270 = scmp.eq.s32.totalorder %s31, 0
      %p271 = por %p269, %p270
      %p272 = scmp.ne.s32.totalorder %s261, %s264
      %p273 = scmp.eq.s32.totalorder %s36, 3
      %p274 = por %p272, %p273
      %p275 = scmp.ne.s32.totalorder %s264, %s265
      %p276 = scmp.eq.s32.totalorder %s36, 0
      %p277 = por %p275, %p276
      %p278 = scmp.ne.s32.totalorder %s264, %s265
      %p279 = scmp.eq.s32.totalorder %s37, 3
      %p280 = por %p278, %p279
      %p282 = scmp.ne.s32.totalorder %s265, %s281
      %p283 = scmp.eq.s32.totalorder %s37, 0
      %p284 = por %p282, %p283
      %s285 = ssub.s32 %s39, %s46
      %p286 = scmp.eq.s32.totalorder %s285, 0
      %s288 = sadd.s32 %s287, 1
      %s289 = scalar_select %p286, %s287, %s288
      %p292 = pneg %p286
      %p293 = scmp.eq.s32.totalorder %s31, 3
      %p294 = por %p292, %p293
      %p295 = scmp.ne.s32.totalorder %s287, %s290
      %p296 = scmp.eq.s32.totalorder %s31, 0
      %p297 = por %p295, %p296
      %p298 = scmp.ne.s32.totalorder %s287, %s290
      %p299 = scmp.eq.s32.totalorder %s36, 3
      %p300 = por %p298, %p299
      %p301 = scmp.ne.s32.totalorder %s290, %s291
      %p302 = scmp.eq.s32.totalorder %s36, 0
      %p303 = por %p301, %p302
      %p304 = scmp.ne.s32.totalorder %s290, %s291
      %p305 = scmp.eq.s32.totalorder %s37, 3
      %p306 = por %p304, %p305
      %p308 = scmp.ne.s32.totalorder %s291, %s307
      %p309 = scmp.eq.s32.totalorder %s37, 0
      %p310 = por %p308, %p309
      %s311 = ssub.s32 %s39, %s46
      %p312 = scmp.eq.s32.totalorder %s311, 0
      %s314 = sadd.s32 %s313, 1
      %s315 = scalar_select %p312, %s313, %s314
      %p318 = pneg %p312
      %p319 = scmp.eq.s32.totalorder %s31, 3
      %p320 = por %p318, %p319
      %p321 = scmp.ne.s32.totalorder %s313, %s316
      %p322 = scmp.eq.s32.totalorder %s31, 0
      %p323 = por %p321, %p322
      %p324 = scmp.ne.s32.totalorder %s313, %s316
      %p325 = scmp.eq.s32.totalorder %s36, 3
      %p326 = por %p324, %p325
      %p327 = scmp.ne.s32.totalorder %s316, %s317
      %p328 = scmp.eq.s32.totalorder %s36, 0
      %p329 = por %p327, %p328
      %p330 = scmp.ne.s32.totalorder %s316, %s317
      %p331 = scmp.eq.s32.totalorder %s37, 3
      %p332 = por %p330, %p331
      %p334 = scmp.ne.s32.totalorder %s317, %s333
      %p335 = scmp.eq.s32.totalorder %s37, 0
      %p336 = por %p334, %p335
      %s337 = ssub.s32 %s39, %s46
      %p338 = scmp.eq.s32.totalorder %s337, 0
      %s340 = sadd.s32 %s339, 1
      %s341 = scalar_select %p338, %s339, %s340
      %p344 = pneg %p338
      %p345 = scmp.eq.s32.totalorder %s31, 3
      %p346 = por %p344, %p345
      %p347 = scmp.ne.s32.totalorder %s339, %s342
      %p348 = scmp.eq.s32.totalorder %s31, 0
      %p349 = por %p347, %p348
      %p350 = scmp.ne.s32.totalorder %s339, %s342
      %p351 = scmp.eq.s32.totalorder %s36, 3
      %p352 = por %p350, %p351
      %p353 = scmp.ne.s32.totalorder %s342, %s343
      %p354 = scmp.eq.s32.totalorder %s36, 0
      %p355 = por %p353, %p354
      %p356 = scmp.ne.s32.totalorder %s342, %s343
      %p357 = scmp.eq.s32.totalorder %s37, 3
      %p358 = por %p356, %p357
      %p360 = scmp.ne.s32.totalorder %s343, %s359
      %p361 = scmp.eq.s32.totalorder %s37, 0
      %p362 = por %p360, %p361
      %s363 = ssub.s32 %s39, %s46
      %p364 = scmp.eq.s32.totalorder %s363, 0
      %s366 = sadd.s32 %s365, 1
      %s367 = scalar_select %p364, %s365, %s366
      %p370 = pneg %p364
      %p371 = scmp.eq.s32.totalorder %s31, 3
      %p372 = por %p370, %p371
      %p373 = scmp.ne.s32.totalorder %s365, %s368
      %p374 = scmp.eq.s32.totalorder %s31, 0
      %p375 = por %p373, %p374
      %p376 = scmp.ne.s32.totalorder %s365, %s368
      %p377 = scmp.eq.s32.totalorder %s36, 3
      %p378 = por %p376, %p377
      %p379 = scmp.ne.s32.totalorder %s368, %s369
      %p380 = scmp.eq.s32.totalorder %s36, 0
      %p381 = por %p379, %p380
      %p382 = scmp.ne.s32.totalorder %s368, %s369
      %p383 = scmp.eq.s32.totalorder %s37, 3
      %p384 = por %p382, %p383
      %p386 = scmp.ne.s32.totalorder %s369, %s385
      %p387 = scmp.eq.s32.totalorder %s37, 0
      %p388 = por %p386, %p387
      %s389 = ssub.s32 %s39, %s46
      %p390 = scmp.eq.s32.totalorder %s389, 0
      %s392 = sadd.s32 %s391, 1
      %s393 = scalar_select %p390, %s391, %s392
      %p396 = pneg %p390
      %p397 = scmp.eq.s32.totalorder %s31, 3
      %p398 = por %p396, %p397
      %p399 = scmp.ne.s32.totalorder %s391, %s394
      %p400 = scmp.eq.s32.totalorder %s31, 0
      %p401 = por %p399, %p400
      %p402 = scmp.ne.s32.totalorder %s391, %s394
      %p403 = scmp.eq.s32.totalorder %s36, 3
      %p404 = por %p402, %p403
      %p405 = scmp.ne.s32.totalorder %s394, %s395
      %p406 = scmp.eq.s32.totalorder %s36, 0
      %p407 = por %p405, %p406
      %p408 = scmp.ne.s32.totalorder %s394, %s395
      %p409 = scmp.eq.s32.totalorder %s37, 3
      %p410 = por %p408, %p409
      %p412 = scmp.ne.s32.totalorder %s395, %s411
      %p413 = scmp.eq.s32.totalorder %s37, 0
      %p414 = por %p412, %p413
      %s415 = ssub.s32 %s39, %s46
      %p416 = scmp.eq.s32.totalorder %s415, 0
      %s418 = sadd.s32 %s417, 1
      %s419 = scalar_select %p416, %s417, %s418
      %p422 = pneg %p416
      %p423 = scmp.eq.s32.totalorder %s31, 3
      %p424 = por %p422, %p423
      %p425 = scmp.ne.s32.totalorder %s417, %s420
      %p426 = scmp.eq.s32.totalorder %s31, 0
      %p427 = por %p425, %p426
      %p428 = scmp.ne.s32.totalorder %s417, %s420
      %p429 = scmp.eq.s32.totalorder %s36, 3
      %p430 = por %p428, %p429
      %p431 = scmp.ne.s32.totalorder %s420, %s421
      %p432 = scmp.eq.s32.totalorder %s36, 0
      %p433 = por %p431, %p432
      %p434 = scmp.ne.s32.totalorder %s420, %s421
      %p435 = scmp.eq.s32.totalorder %s37, 3
      %p436 = por %p434, %p435
      %p438 = scmp.ne.s32.totalorder %s421, %s437
      %p439 = scmp.eq.s32.totalorder %s37, 0
      %p440 = por %p438, %p439
      %s441 = ssub.s32 %s39, %s46
      %p442 = scmp.eq.s32.totalorder %s441, 0
      %s444 = sadd.s32 %s443, 1
      %s445 = scalar_select %p442, %s443, %s444
      %p448 = pneg %p442
      %p449 = scmp.eq.s32.totalorder %s31, 3
      %p450 = por %p448, %p449
      %p451 = scmp.ne.s32.totalorder %s443, %s446
      %p452 = scmp.eq.s32.totalorder %s31, 0
      %p453 = por %p451, %p452
      %p454 = scmp.ne.s32.totalorder %s443, %s446
      %p455 = scmp.eq.s32.totalorder %s36, 3
      %p456 = por %p454, %p455
      %p457 = scmp.ne.s32.totalorder %s446, %s447
      %p458 = scmp.eq.s32.totalorder %s36, 0
      %p459 = por %p457, %p458
      %p460 = scmp.ne.s32.totalorder %s446, %s447
      %p461 = scmp.eq.s32.totalorder %s37, 3
      %p462 = por %p460, %p461
      %p464 = scmp.ne.s32.totalorder %s447, %s463
      %p465 = scmp.eq.s32.totalorder %s37, 0
      %p466 = por %p464, %p465
      %s467 = ssub.s32 %s38, %s50
      %p468 = scmp.eq.s32.totalorder %s467, 0
      %s470 = sadd.s32 %s469, 1
      %s471 = scalar_select %p468, %s469, %s470
      %p474 = pneg %p468
      %p475 = scmp.eq.s32.totalorder %s31, 3
      %p476 = por %p474, %p475
      %p477 = scmp.ne.s32.totalorder %s469, %s472
      %p478 = scmp.eq.s32.totalorder %s31, 0
      %p479 = por %p477, %p478
      %p480 = scmp.ne.s32.totalorder %s469, %s472
      %p481 = scmp.eq.s32.totalorder %s36, 3
      %p482 = por %p480, %p481
      %p483 = scmp.ne.s32.totalorder %s472, %s473
      %p484 = scmp.eq.s32.totalorder %s36, 0
      %p485 = por %p483, %p484
      %p486 = scmp.ne.s32.totalorder %s472, %s473
      %p487 = scmp.eq.s32.totalorder %s37, 3
      %p488 = por %p486, %p487
      %p490 = scmp.ne.s32.totalorder %s473, %s489
      %p491 = scmp.eq.s32.totalorder %s37, 0
      %p492 = por %p490, %p491
      %p493 = scmp.le.s32.totalorder 1, %s31
      %p494 = scmp.lt.s32.totalorder %s31, 5
      %p495 = pnand %p493, %p494
      %p496 = pneg %p495
      // Predicated region
      $region9: #{tpu_custom_call.1} parent=5 // pred_check
        _
      $region10: #{tpu_custom_call.1} parent=5 // pred_check_branch
        %498 = sbr.rel (%p495) target = $region12
      $region11: #{tpu_custom_call.1} parent=5 // pred_region
        %s499 = ssub.s32 %s31, 1
      $region12: #{tpu_custom_call.1} parent=5 // pred_fallthru
        _
      %p500 = scmp.lt.s32.totalorder %s31, 4
      // Predicated region
      $region13: #{tpu_custom_call.1} parent=5 // pred_check
        %p501 = pneg %p500
      $region14: #{tpu_custom_call.1} parent=5 // pred_check_branch
        %503 = sbr.rel (%p501) target = $region16
      $region15: #{tpu_custom_call.1} parent=5 // pred_region
        // Predicated region
        $region17: #{tpu_custom_call.1} parent=15 // pred_check
          %p504 = pneg %p63
        $region18: #{tpu_custom_call.1} parent=15 // pred_check_branch
          %506 = sbr.rel (%p504) target = $region20
        $region19: #{tpu_custom_call.1} parent=15 // pred_region
          %s507 = sand.u32 %s53, 1
          %s508 = scalar_lea.sflag [#allocation4], %s507
          %s509 = sand.u32 %s53, 1
          %s510 = smul.addr %s509, 8
          %s511 = scalar_lea.vmem [#allocation3], %s510
          %s513 = ssub.s32 128, 128
          %514 = vsyncadd %s508, %s513
          %s515 = smul.addr %s38, 128
          %s516 = scalar_lea.hbm %s0, %s515
          %s518 = sshll.u32 %s511, 4
          %s519 = int_to_ptr.vmem [resolvable:$true] %s518
          %521 = dma.hbm_to_vmem [thread:$0]  %s516, 128, %s519, %s508
        $region20: #{tpu_custom_call.1} parent=15 // pred_fallthru
          _
        // Predicated region
        $region21: #{tpu_custom_call.1} parent=15 // pred_check
          %p522 = pneg %p89
        $region22: #{tpu_custom_call.1} parent=15 // pred_check_branch
          %524 = sbr.rel (%p522) target = $region24
        $region23: #{tpu_custom_call.1} parent=15 // pred_region
          %s525 = sand.u32 %s31, 1
          %s526 = scalar_lea.sflag [#allocation7], %s525
          %s527 = sand.u32 %s79, 1
          %s528 = smul.addr %s527, 8
          %s529 = scalar_lea.vmem [#allocation6], %s528
          %s531 = ssub.s32 128, 128
          %532 = vsyncadd %s526, %s531
          %s533 = smul.addr %s38, 128
          %s534 = scalar_lea.hbm %s1, %s533
          %s536 = sshll.u32 %s529, 4
          %s537 = int_to_ptr.vmem [resolvable:$true] %s536
          %539 = dma.hbm_to_vmem [thread:$0]  %s534, 128, %s537, %s526
        $region24: #{tpu_custom_call.1} parent=15 // pred_fallthru
          _
        // Predicated region
        $region25: #{tpu_custom_call.1} parent=15 // pred_check
          %p540 = pneg %p115
        $region26: #{tpu_custom_call.1} parent=15 // pred_check_branch
          %542 = sbr.rel (%p540) target = $region28
        $region27: #{tpu_custom_call.1} parent=15 // pred_region
          %p543 = scmp.lt.s32.totalorder %s39, 1
          %s544 = scalar_select %p543, %s39, 1
          %s545 = smul.addr %s544, 4
          %s546 = smul.addr %s545, 4
          %s547 = scalar_lea.vmem %s2, %s546
        $region28: #{tpu_custom_call.1} parent=15 // pred_fallthru
          _
        // Predicated region
        $region29: #{tpu_custom_call.1} parent=15 // pred_check
          %p548 = pneg %p141
        $region30: #{tpu_custom_call.1} parent=15 // pred_check_branch
          %550 = sbr.rel (%p548) target = $region32
        $region31: #{tpu_custom_call.1} parent=15 // pred_region
          %p551 = scmp.lt.s32.totalorder %s39, 1
          %s552 = scalar_select %p551, %s39, 1
          %s553 = scalar_lea.vmem %s3, %s552
        $region32: #{tpu_custom_call.1} parent=15 // pred_fallthru
          _
        // Predicated region
        $region33: #{tpu_custom_call.1} parent=15 // pred_check
          %p554 = pneg %p167
        $region34: #{tpu_custom_call.1} parent=15 // pred_check_branch
          %556 = sbr.rel (%p554) target = $region36
        $region35: #{tpu_custom_call.1} parent=15 // pred_region
          %p557 = scmp.lt.s32.totalorder %s39, 1
          %s558 = scalar_select %p557, %s39, 1
          %s559 = smul.addr %s558, 4
          %s560 = smul.addr %s559, 4
          %s561 = scalar_lea.vmem %s4, %s560
        $region36: #{tpu_custom_call.1} parent=15 // pred_fallthru
          _
        // Predicated region
        $region37: #{tpu_custom_call.1} parent=15 // pred_check
          %p562 = pneg %p193
        $region38: #{tpu_custom_call.1} parent=15 // pred_check_branch
          %564 = sbr.rel (%p562) target = $region40
        $region39: #{tpu_custom_call.1} parent=15 // pred_region
          %p565 = scmp.lt.s32.totalorder %s39, 1
          %s566 = scalar_select %p565, %s39, 1
          %s567 = scalar_lea.vmem %s5, %s566
        $region40: #{tpu_custom_call.1} parent=15 // pred_fallthru
          _
        // Predicated region
        $region41: #{tpu_custom_call.1} parent=15 // pred_check
          %p568 = pneg %p219
        $region42: #{tpu_custom_call.1} parent=15 // pred_check_branch
          %570 = sbr.rel (%p568) target = $region44
        $region43: #{tpu_custom_call.1} parent=15 // pred_region
          %p571 = scmp.lt.s32.totalorder %s39, 1
          %s572 = scalar_select %p571, %s39, 1
          %s573 = smul.addr %s572, 4
          %s574 = smul.addr %s573, 4
          %s575 = scalar_lea.vmem %s6, %s574
        $region44: #{tpu_custom_call.1} parent=15 // pred_fallthru
          _
        // Predicated region
        $region45: #{tpu_custom_call.1} parent=15 // pred_check
          %p576 = pneg %p245
        $region46: #{tpu_custom_call.1} parent=15 // pred_check_branch
          %578 = sbr.rel (%p576) target = $region48
        $region47: #{tpu_custom_call.1} parent=15 // pred_region
          %p579 = scmp.lt.s32.totalorder %s39, 1
          %s580 = scalar_select %p579, %s39, 1
          %s581 = scalar_lea.vmem %s7, %s580
        $region48: #{tpu_custom_call.1} parent=15 // pred_fallthru
          _
        // Predicated region
        $region49: #{tpu_custom_call.1} parent=15 // pred_check
          %p582 = pneg %p271
        $region50: #{tpu_custom_call.1} parent=15 // pred_check_branch
          %584 = sbr.rel (%p582) target = $region52
        $region51: #{tpu_custom_call.1} parent=15 // pred_region
          %p585 = scmp.lt.s32.totalorder %s39, 1
          %s586 = scalar_select %p585, %s39, 1
          %s587 = scalar_lea.vmem %s8, %s586
        $region52: #{tpu_custom_call.1} parent=15 // pred_fallthru
          _
        // Predicated region
        $region53: #{tpu_custom_call.1} parent=15 // pred_check
          %p588 = pneg %p297
        $region54: #{tpu_custom_call.1} parent=15 // pred_check_branch
          %590 = sbr.rel (%p588) target = $region56
        $region55: #{tpu_custom_call.1} parent=15 // pred_region
          %p591 = scmp.lt.s32.totalorder %s39, 1
          %s592 = scalar_select %p591, %s39, 1
          %s593 = scalar_lea.vmem %s9, %s592
        $region56: #{tpu_custom_call.1} parent=15 // pred_fallthru
          _
        // Predicated region
        $region57: #{tpu_custom_call.1} parent=15 // pred_check
          %p594 = pneg %p323
        $region58: #{tpu_custom_call.1} parent=15 // pred_check_branch
          %596 = sbr.rel (%p594) target = $region60
        $region59: #{tpu_custom_call.1} parent=15 // pred_region
          %s597 = sand.u32 %s31, 1
          %s598 = scalar_lea.sflag [#allocation7], %s597
          %s599 = sand.u32 %s313, 1
          %s600 = smul.addr %s599, 16
          %s601 = scalar_lea.vmem [#allocation8], %s600
          %s603 = ssub.s32 256, 256
          %604 = vsyncadd %s598, %s603
          %s605 = smul.addr %s39, 4
          %s606 = smul.addr %s605, 64
          %s607 = scalar_lea.hbm %s10, %s606
          %s608 = sshll.u32 %s601, 4
          %s609 = int_to_ptr.vmem [resolvable:$true] %s608
          %614 = dma.hbm_to_vmem [thread:$0]  %s607, 256, %s609, %s598, 64, 64, 4
        $region60: #{tpu_custom_call.1} parent=15 // pred_fallthru
          _
        // Predicated region
        $region61: #{tpu_custom_call.1} parent=15 // pred_check
          %p615 = pneg %p349
        $region62: #{tpu_custom_call.1} parent=15 // pred_check_branch
          %617 = sbr.rel (%p615) target = $region64
        $region63: #{tpu_custom_call.1} parent=15 // pred_region
          %p618 = scmp.lt.s32.totalorder %s39, 1
          %s619 = scalar_select %p618, %s39, 1
          %s620 = scalar_lea.vmem %s11, %s619
        $region64: #{tpu_custom_call.1} parent=15 // pred_fallthru
          _
        // Predicated region
        $region65: #{tpu_custom_call.1} parent=15 // pred_check
          %p621 = pneg %p375
        $region66: #{tpu_custom_call.1} parent=15 // pred_check_branch
          %623 = sbr.rel (%p621) target = $region68
        $region67: #{tpu_custom_call.1} parent=15 // pred_region
          %p624 = scmp.lt.s32.totalorder %s39, 1
          %s625 = scalar_select %p624, %s39, 1
          %s626 = smul.addr %s625, 8
          %s627 = smul.addr %s626, 4
          %s628 = scalar_lea.vmem %s12, %s627
        $region68: #{tpu_custom_call.1} parent=15 // pred_fallthru
          _
        // Predicated region
        $region69: #{tpu_custom_call.1} parent=15 // pred_check
          %p629 = pneg %p401
        $region70: #{tpu_custom_call.1} parent=15 // pred_check_branch
          %631 = sbr.rel (%p629) target = $region72
        $region71: #{tpu_custom_call.1} parent=15 // pred_region
          %p632 = scmp.lt.s32.totalorder %s39, 1
          %s633 = scalar_select %p632, %s39, 1
          %s634 = scalar_lea.vmem %s13, %s633
        $region72: #{tpu_custom_call.1} parent=15 // pred_fallthru
          _
        // Predicated region
        $region73: #{tpu_custom_call.1} parent=15 // pred_check
          %p635 = pneg %p427
        $region74: #{tpu_custom_call.1} parent=15 // pred_check_branch
          %637 = sbr.rel (%p635) target = $region76
        $region75: #{tpu_custom_call.1} parent=15 // pred_region
          %p638 = scmp.lt.s32.totalorder %s39, 1
          %s639 = scalar_select %p638, %s39, 1
          %s640 = scalar_lea.vmem %s14, %s639
        $region76: #{tpu_custom_call.1} parent=15 // pred_fallthru
          _
        // Predicated region
        $region77: #{tpu_custom_call.1} parent=15 // pred_check
          %p641 = pneg %p453
        $region78: #{tpu_custom_call.1} parent=15 // pred_check_branch
          %643 = sbr.rel (%p641) target = $region80
        $region79: #{tpu_custom_call.1} parent=15 // pred_region
          %p644 = scmp.lt.s32.totalorder %s39, 1
          %s645 = scalar_select %p644, %s39, 1
          %s646 = scalar_lea.vmem %s15, %s645
        $region80: #{tpu_custom_call.1} parent=15 // pred_fallthru
          _
      $region16: #{tpu_custom_call.1} parent=5 // pred_fallthru
        _
      %p647 = scmp.le.s32.totalorder 1, %s31
      %p648 = scmp.lt.s32.totalorder %s31, 5
      %p649 = pnand %p647, %p648
      %p650 = pneg %p649
      // Predicated region
      $region81: #{tpu_custom_call.1} parent=5 // pred_check
        _
      $region82: #{tpu_custom_call.1} parent=5 // pred_check_branch
        %652 = sbr.rel (%p649) target = $region84
      $region83: #{tpu_custom_call.1} parent=5 // pred_region
        %s653 = ssub.s32 %s31, 1
        %s654 = sand.u32 %s56, 1
        %s655 = scalar_lea.sflag [#allocation4], %s654
        %s656 = sand.u32 %s56, 1
        %s657 = smul.addr %s656, 8
        %s658 = scalar_lea.vmem [#allocation3], %s657
        // Predicated region
        $region85: #{tpu_custom_call.1} parent=83 // pred_check
          %p659 = pneg %p69
        $region86: #{tpu_custom_call.1} parent=83 // pred_check_branch
          %661 = sbr.rel (%p659) target = $region88
        $region87: #{tpu_custom_call.1} parent=83 // pred_region
          %662 = dma.done %s655, 128
        $region88: #{tpu_custom_call.1} parent=83 // pred_fallthru
          _
        %s663 = sand.u32 %s36, 1
        %s664 = scalar_lea.sflag [#allocation7], %s663
        %s665 = sand.u32 %s82, 1
        %s666 = smul.addr %s665, 8
        %s667 = scalar_lea.vmem [#allocation6], %s666
        // Predicated region
        $region89: #{tpu_custom_call.1} parent=83 // pred_check
          %p668 = pneg %p95
        $region90: #{tpu_custom_call.1} parent=83 // pred_check_branch
          %670 = sbr.rel (%p668) target = $region92
        $region91: #{tpu_custom_call.1} parent=83 // pred_region
          %671 = dma.done %s664, 128
        $region92: #{tpu_custom_call.1} parent=83 // pred_fallthru
          _
        %s672 = sand.u32 %s36, 1
        %s673 = scalar_lea.sflag [#allocation7], %s672
        %s674 = sand.u32 %s316, 1
        %s675 = smul.addr %s674, 16
        %s676 = scalar_lea.vmem [#allocation8], %s675
        // Predicated region
        $region93: #{tpu_custom_call.1} parent=83 // pred_check
          %p677 = pneg %p329
        $region94: #{tpu_custom_call.1} parent=83 // pred_check_branch
          %679 = sbr.rel (%p677) target = $region96
        $region95: #{tpu_custom_call.1} parent=83 // pred_region
          %680 = dma.done %s673, 256
        $region96: #{tpu_custom_call.1} parent=83 // pred_fallthru
          _
        %s681 = sand.u32 %s56, 1
        %s682 = scalar_lea.sflag [#allocation4], %s681
        %s683 = sand.u32 %s56, 1
        %s684 = smul.addr %s683, 8
        %s685 = scalar_lea.vmem [#allocation3], %s684
        %p686 = pneg %p69
        %p687 = pneg %p66
        %s688 = sand.u32 %s36, 1
        %s689 = scalar_lea.sflag [#allocation7], %s688
        %s690 = sand.u32 %s82, 1
        %s691 = smul.addr %s690, 8
        %s692 = scalar_lea.vmem [#allocation6], %s691
        %p693 = pneg %p95
        %p694 = pneg %p92
        %p695 = scmp.lt.s32.totalorder %s41, 1
        %s696 = scalar_select %p695, %s41, 1
        %s697 = smul.addr %s696, 4
        %s698 = smul.addr %s697, 4
        %s699 = scalar_lea.vmem %s2, %s698
        %p700 = pneg %p121
        %p701 = pneg %p118
        %p702 = scmp.lt.s32.totalorder %s41, 1
        %s703 = scalar_select %p702, %s41, 1
        %s704 = scalar_lea.vmem %s3, %s703
        %p705 = pneg %p147
        %p706 = pneg %p144
        %p707 = scmp.lt.s32.totalorder %s41, 1
        %s708 = scalar_select %p707, %s41, 1
        %s709 = smul.addr %s708, 4
        %s710 = smul.addr %s709, 4
        %s711 = scalar_lea.vmem %s4, %s710
        %p712 = pneg %p173
        %p713 = pneg %p170
        %p714 = scmp.lt.s32.totalorder %s41, 1
        %s715 = scalar_select %p714, %s41, 1
        %s716 = scalar_lea.vmem %s5, %s715
        %p717 = pneg %p199
        %p718 = pneg %p196
        %p719 = scmp.lt.s32.totalorder %s41, 1
        %s720 = scalar_select %p719, %s41, 1
        %s721 = smul.addr %s720, 4
        %s722 = smul.addr %s721, 4
        %s723 = scalar_lea.vmem %s6, %s722
        %p724 = pneg %p225
        %p725 = pneg %p222
        %p726 = scmp.lt.s32.totalorder %s41, 1
        %s727 = scalar_select %p726, %s41, 1
        %s728 = scalar_lea.vmem %s7, %s727
        %p729 = pneg %p251
        %p730 = pneg %p248
        %p731 = scmp.lt.s32.totalorder %s41, 1
        %s732 = scalar_select %p731, %s41, 1
        %s733 = scalar_lea.vmem %s8, %s732
        %p734 = pneg %p277
        %p735 = pneg %p274
        %p736 = scmp.lt.s32.totalorder %s41, 1
        %s737 = scalar_select %p736, %s41, 1
        %s738 = scalar_lea.vmem %s9, %s737
        %p739 = pneg %p303
        %p740 = pneg %p300
        %s741 = sand.u32 %s36, 1
        %s742 = scalar_lea.sflag [#allocation7], %s741
        %s743 = sand.u32 %s316, 1
        %s744 = smul.addr %s743, 16
        %s745 = scalar_lea.vmem [#allocation8], %s744
        %p746 = pneg %p329
        %p747 = pneg %p326
        %p748 = scmp.lt.s32.totalorder %s41, 1
        %s749 = scalar_select %p748, %s41, 1
        %s750 = scalar_lea.vmem %s11, %s749
        %p751 = pneg %p355
        %p752 = pneg %p352
        %p753 = scmp.lt.s32.totalorder %s41, 1
        %s754 = scalar_select %p753, %s41, 1
        %s755 = smul.addr %s754, 8
        %s756 = smul.addr %s755, 4
        %s757 = scalar_lea.vmem %s12, %s756
        %p758 = pneg %p381
        %p759 = pneg %p378
        %p760 = scmp.lt.s32.totalorder %s41, 1
        %s761 = scalar_select %p760, %s41, 1
        %s762 = scalar_lea.vmem %s13, %s761
        %p763 = pneg %p407
        %p764 = pneg %p404
        %p765 = scmp.lt.s32.totalorder %s41, 1
        %s766 = scalar_select %p765, %s41, 1
        %s767 = scalar_lea.vmem %s14, %s766
        %p768 = pneg %p433
        %p769 = pneg %p430
        %p770 = scmp.lt.s32.totalorder %s41, 1
        %s771 = scalar_select %p770, %s41, 1
        %s772 = scalar_lea.vmem %s15, %s771
        %p773 = pneg %p459
        %p774 = pneg %p456
        %p775 = pneg %p485
        %p776 = pneg %p482
        %s777 = sand.u32 %s472, 1
        %s778 = scalar_lea.sflag [#allocation5], %s777
        %s779 = sand.u32 %s472, 1
        %s780 = smul.addr %s779, 8
        %s781 = scalar_lea.vmem [#allocation9], %s780
        %p782 = scmp.lt.s32.totalorder %s41, 1
        %s783 = scalar_select %p782, %s41, 1
        %s784 = smul.addr %s783, 4
        %s785 = smul.addr %s784, 4
        %s786 = scalar_lea.vmem %s2, %s785
        %p787 = scmp.lt.s32.totalorder %s41, 1
        %s788 = scalar_select %p787, %s41, 1
        %s789 = scalar_lea.vmem %s3, %s788
        %p790 = scmp.lt.s32.totalorder %s41, 1
        %s791 = scalar_select %p790, %s41, 1
        %s792 = smul.addr %s791, 4
        %s793 = smul.addr %s792, 4
        %s794 = scalar_lea.vmem %s4, %s793
        %p795 = scmp.lt.s32.totalorder %s41, 1
        %s796 = scalar_select %p795, %s41, 1
        %s797 = scalar_lea.vmem %s5, %s796
        %p798 = scmp.lt.s32.totalorder %s41, 1
        %s799 = scalar_select %p798, %s41, 1
        %s800 = smul.addr %s799, 4
        %s801 = smul.addr %s800, 4
        %s802 = scalar_lea.vmem %s6, %s801
        %p803 = scmp.lt.s32.totalorder %s41, 1
        %s804 = scalar_select %p803, %s41, 1
        %s805 = scalar_lea.vmem %s7, %s804
        %p806 = scmp.lt.s32.totalorder %s41, 1
        %s807 = scalar_select %p806, %s41, 1
        %s808 = scalar_lea.vmem %s8, %s807
        %p809 = scmp.lt.s32.totalorder %s41, 1
        %s810 = scalar_select %p809, %s41, 1
        %s811 = scalar_lea.vmem %s9, %s810
        %p812 = scmp.lt.s32.totalorder %s41, 1
        %s813 = scalar_select %p812, %s41, 1
        %s814 = scalar_lea.vmem %s11, %s813
        %p815 = scmp.lt.s32.totalorder %s41, 1
        %s816 = scalar_select %p815, %s41, 1
        %s817 = smul.addr %s816, 8
        %s818 = smul.addr %s817, 4
        %s819 = scalar_lea.vmem %s12, %s818
        %p820 = scmp.lt.s32.totalorder %s41, 1
        %s821 = scalar_select %p820, %s41, 1
        %s822 = scalar_lea.vmem %s13, %s821
        %p823 = scmp.lt.s32.totalorder %s41, 1
        %s824 = scalar_select %p823, %s41, 1
        %s825 = scalar_lea.vmem %s14, %s824
        %p826 = scmp.lt.s32.totalorder %s41, 1
        %s827 = scalar_select %p826, %s41, 1
        %s828 = scalar_lea.vmem %s15, %s827
        %p830 = scmp.eq.s32.totalorder %s41, 0
        // Predicated region
        $region97: #{tpu_custom_call.1} parent=83 // pred_check
          %p831 = pneg %p830
        $region98: #{tpu_custom_call.1} parent=83 // pred_check_branch
          %833 = sbr.rel (%p831) target = $region100
        $region99: #{tpu_custom_call.1} parent=83 // pred_region
          %v834 = vld [vmem:[%s658] sm:$0xff]
          %vm835 = vcmask 261120
          %836 = vst.msk [vmem:[#allocation2] sm:$0xff] %vm835, %v834
        $region100: #{tpu_custom_call.1} parent=83 // pred_fallthru
          _
        %v837 = vld [vmem:[#allocation2] sm:$0xff]
        %v838 = vld [vmem:[%s667] sm:$0xff]
        %v839 = vpack.c.bf16 %v837, %v837
        %v840 = vld [vmem:[%s786] sm:$0xf]
        %v841 = vld [vmem:[%s786 + $0x4] sm:$0xf]
        %v842 = vld [vmem:[%s786 + $0x8] sm:$0xf]
        %v843 = vld [vmem:[%s786 + $0xc] sm:$0xf]
        %v844 = vld [vmem:[%s789] sm:$0x1]
        %v846 = vlaneseq
        %v847 = vshrl.u32 %v846, 7
        %v848 = vsub.s32 0, %v847
        %v849 = vrot.slane %v844, %v848
        %v855 = vunpack.c.l.b16 %v840
        %v856 = vunpack.c.l.b16 %v841
        %v857 = vunpack.c.l.b16 %v842
        %v858 = vunpack.c.l.b16 %v843
        %v859 = vpack.c.b16 %v856, %v855
        %v860 = vpack.c.b16 %v858, %v857
        %vm863 = vcmask 261120
        %v865 = vsel %vm863, %v839, 0
        %867 = vmatprep.subr.bf16.mxu0 0
        %868 = vmatpush1.bf16.msra.mxu0 %v859
        %869 = vmatprep.subr.bf16.mxu0 0
        %870 = vmatpush1.bf16.msra.mxu0 %v860
        %871 = vmatprep.subr.bf16.mxu0 0
        %872 = vmatpush1.bf16.msra.mxu0 0
        %873 = vmatprep.subr.bf16.mxu0 0
        %874 = vmatpush1.bf16.msra.mxu0 0
        %875 = vmatprep.subr.bf16.mxu0 0
        %876 = vmatpush1.bf16.msra.mxu0 0
        %877 = vmatprep.subr.bf16.mxu0 0
        %878 = vmatpush1.bf16.msra.mxu0 0
        %879 = vmatprep.subr.bf16.mxu0 0
        %880 = vmatpush1.bf16.msra.mxu0 0
        %881 = vmatprep.subr.bf16.mxu0 0
        %882 = vmatpush1.bf16.msra.mxu0 0
        %883 = vmatprep.subr.bf16.mxu0 0
        %884 = vmatpush1.bf16.msra.mxu0 0
        %885 = vmatprep.subr.bf16.mxu0 0
        %886 = vmatpush1.bf16.msra.mxu0 0
        %887 = vmatprep.subr.bf16.mxu0 0
        %888 = vmatpush1.bf16.msra.mxu0 0
        %889 = vmatprep.subr.bf16.mxu0 0
        %890 = vmatpush1.bf16.msra.mxu0 0
        %891 = vmatprep.subr.bf16.mxu0 0
        %892 = vmatpush1.bf16.msra.mxu0 0
        %893 = vmatprep.subr.bf16.mxu0 0
        %894 = vmatpush1.bf16.msra.mxu0 0
        %895 = vmatprep.subr.bf16.mxu0 0
        %896 = vmatpush1.bf16.msra.mxu0 0
        %897 = vmatprep.subr.bf16.mxu0 0
        %898 = vmatpush1.bf16.msra.mxu0 0
        %899 = vmatprep.mubr.bf16.mxu0 0
        %900 = vmatmul.mubr.bf16.gmra.mrb[0].mxu0 %v865
        %v901 = vpop.f32.mrb[0].mxu0
        %v902 = vadd.f32 %v849, %v901
        %v903 = vpop.f32.mrb[0].mxu0
        %v904 = vpop.f32.mrb[0].mxu0
        %v905 = vpop.f32.mrb[0].mxu0
        %906 = vdwg.mxu0
        %v907 = vpack.c.bf16 %v838, %v838
        %v908 = vld [vmem:[%s794] sm:$0xf]
        %v909 = vld [vmem:[%s794 + $0x4] sm:$0xf]
        %v910 = vld [vmem:[%s794 + $0x8] sm:$0xf]
        %v911 = vld [vmem:[%s794 + $0xc] sm:$0xf]
        %v912 = vld [vmem:[%s797] sm:$0x1]
        %v914 = vlaneseq
        %v915 = vshrl.u32 %v914, 7
        %v916 = vsub.s32 0, %v915
        %v917 = vrot.slane %v912, %v916
        %v923 = vunpack.c.l.b16 %v908
        %v924 = vunpack.c.l.b16 %v909
        %v925 = vunpack.c.l.b16 %v910
        %v926 = vunpack.c.l.b16 %v911
        %v927 = vpack.c.b16 %v924, %v923
        %v928 = vpack.c.b16 %v926, %v925
        %v932 = vsel %vm863, %v907, 0
        %934 = vmatprep.subr.bf16.mxu0 0
        %935 = vmatpush1.bf16.msra.mxu0 %v927
        %936 = vmatprep.subr.bf16.mxu0 0
        %937 = vmatpush1.bf16.msra.mxu0 %v928
        %938 = vmatprep.subr.bf16.mxu0 0
        %939 = vmatpush1.bf16.msra.mxu0 0
        %940 = vmatprep.subr.bf16.mxu0 0
        %941 = vmatpush1.bf16.msra.mxu0 0
        %942 = vmatprep.subr.bf16.mxu0 0
        %943 = vmatpush1.bf16.msra.mxu0 0
        %944 = vmatprep.subr.bf16.mxu0 0
        %945 = vmatpush1.bf16.msra.mxu0 0
        %946 = vmatprep.subr.bf16.mxu0 0
        %947 = vmatpush1.bf16.msra.mxu0 0
        %948 = vmatprep.subr.bf16.mxu0 0
        %949 = vmatpush1.bf16.msra.mxu0 0
        %950 = vmatprep.subr.bf16.mxu0 0
        %951 = vmatpush1.bf16.msra.mxu0 0
        %952 = vmatprep.subr.bf16.mxu0 0
        %953 = vmatpush1.bf16.msra.mxu0 0
        %954 = vmatprep.subr.bf16.mxu0 0
        %955 = vmatpush1.bf16.msra.mxu0 0
        %956 = vmatprep.subr.bf16.mxu0 0
        %957 = vmatpush1.bf16.msra.mxu0 0
        %958 = vmatprep.subr.bf16.mxu0 0
        %959 = vmatpush1.bf16.msra.mxu0 0
        %960 = vmatprep.subr.bf16.mxu0 0
        %961 = vmatpush1.bf16.msra.mxu0 0
        %962 = vmatprep.subr.bf16.mxu0 0
        %963 = vmatpush1.bf16.msra.mxu0 0
        %964 = vmatprep.subr.bf16.mxu0 0
        %965 = vmatpush1.bf16.msra.mxu0 0
        %966 = vmatprep.mubr.bf16.mxu0 0
        %967 = vmatmul.mubr.bf16.gmra.mrb[0].mxu0 %v932
        %v968 = vpop.f32.mrb[0].mxu0
        %v969 = vadd.f32 %v917, %v968
        %v970 = vpop.f32.mrb[0].mxu0
        %v971 = vpop.f32.mrb[0].mxu0
        %v972 = vpop.f32.mrb[0].mxu0
        %973 = vdwg.mxu0
        %975 = vrot.lane.b32.xlu0 %v902, 120
        %v976 = vpop.permute.xlu0 %975
        %978 = vrot.lane.b32.xlu0 %v902, 112
        %v979 = vpop.permute.xlu0 %978
        %981 = vrot.lane.b32.xlu0 %v902, 104
        %v982 = vpop.permute.xlu0 %981
        %v984 = vcombine.low %v902, %v979
        %v985 = vcombine.high %v902, %v979
        %v987 = vunpack.c.l.s4 1983009808
        %v988 = vunpack.c.0.s8 %v987
        %v989 = vlaneseq
        %v990 = vshrl.u32 %v989, 7
        %v991 = vsub.s32 %v988, %v990
        %v992 = vrot.slane %v984, %v991
        %v994 = vunpack.c.l.s4 1983009808
        %v995 = vunpack.c.0.s8 %v994
        %v996 = vlaneseq
        %v997 = vshrl.u32 %v996, 7
        %v998 = vsub.s32 %v995, %v997
        %v999 = vrot.slane %v985, %v998
        %v1000 = vcombine.low %v976, %v982
        %v1001 = vcombine.high %v976, %v982
        %v1003 = vunpack.c.l.s4 1983009808
        %v1004 = vunpack.c.0.s8 %v1003
        %v1005 = vlaneseq
        %v1006 = vshrl.u32 %v1005, 7
        %v1007 = vsub.s32 %v1004, %v1006
        %v1008 = vrot.slane %v1000, %v1007
        %v1010 = vunpack.c.l.s4 1983009808
        %v1011 = vunpack.c.0.s8 %v1010
        %v1012 = vlaneseq
        %v1013 = vshrl.u32 %v1012, 7
        %v1014 = vsub.s32 %v1011, %v1013
        %v1015 = vrot.slane %v1001, %v1014
        %v1016 = vcombine.low %v992, %v1008
        %v1017 = vcombine.high %v992, %v1008
        %v1019 = vunpack.c.l.s4 1934713408
        %v1020 = vunpack.c.0.s8 %v1019
        %v1021 = vlaneseq
        %v1022 = vshrl.u32 %v1021, 7
        %v1023 = vsub.s32 %v1020, %v1022
        %v1024 = vrot.slane %v1016, %v1023
        %v1026 = vunpack.c.l.s4 1934713408
        %v1027 = vunpack.c.0.s8 %v1026
        %v1028 = vlaneseq
        %v1029 = vshrl.u32 %v1028, 7
        %v1030 = vsub.s32 %v1027, %v1029
        %v1031 = vrot.slane %v1017, %v1030
        %v1032 = vcombine.low %v999, %v1015
        %v1033 = vcombine.high %v999, %v1015
        %v1035 = vunpack.c.l.s4 1934713408
        %v1036 = vunpack.c.0.s8 %v1035
        %v1037 = vlaneseq
        %v1038 = vshrl.u32 %v1037, 7
        %v1039 = vsub.s32 %v1036, %v1038
        %v1040 = vrot.slane %v1032, %v1039
        %v1042 = vunpack.c.l.s4 1934713408
        %v1043 = vunpack.c.0.s8 %v1042
        %v1044 = vlaneseq
        %v1045 = vshrl.u32 %v1044, 7
        %v1046 = vsub.s32 %v1043, %v1045
        %v1047 = vrot.slane %v1033, %v1046
        %v1048 = vcombine.high %v1024, 0.0
        %v1049 = vcombine.high %v1031, 0.0
        %v1050 = vcombine.high %v1040, 0.0
        %v1051 = vcombine.high %v1047, 0.0
        %v1052 = vcombine.low %v1024, %v1031
        %v1054 = vunpack.c.l.s4 1983009808
        %v1055 = vunpack.c.0.s8 %v1054
        %v1056 = vlaneseq
        %v1057 = vshrl.u32 %v1056, 7
        %v1058 = vsub.s32 %v1055, %v1057
        %v1059 = vrot.slane %v1052, %v1058
        %v1060 = vcombine.low %v1048, %v1049
        %v1062 = vunpack.c.l.s4 1983009808
        %v1063 = vunpack.c.0.s8 %v1062
        %v1064 = vlaneseq
        %v1065 = vshrl.u32 %v1064, 7
        %v1066 = vsub.s32 %v1063, %v1065
        %v1067 = vrot.slane %v1060, %v1066
        %v1068 = vcombine.low %v1040, %v1047
        %v1070 = vunpack.c.l.s4 1983009808
        %v1071 = vunpack.c.0.s8 %v1070
        %v1072 = vlaneseq
        %v1073 = vshrl.u32 %v1072, 7
        %v1074 = vsub.s32 %v1071, %v1073
        %v1075 = vrot.slane %v1068, %v1074
        %v1076 = vcombine.low %v1050, %v1051
        %v1078 = vunpack.c.l.s4 1983009808
        %v1079 = vunpack.c.0.s8 %v1078
        %v1080 = vlaneseq
        %v1081 = vshrl.u32 %v1080, 7
        %v1082 = vsub.s32 %v1079, %v1081
        %v1083 = vrot.slane %v1076, %v1082
        %v1084 = vcombine.low %v1059, %v1067
        %v1085 = vcombine.high %v1059, %v1067
        %v1087 = vunpack.c.l.s4 1934713408
        %v1088 = vunpack.c.0.s8 %v1087
        %v1089 = vlaneseq
        %v1090 = vshrl.u32 %v1089, 7
        %v1091 = vsub.s32 %v1088, %v1090
        %v1092 = vrot.slane %v1084, %v1091
        %v1094 = vunpack.c.l.s4 1934713408
        %v1095 = vunpack.c.0.s8 %v1094
        %v1096 = vlaneseq
        %v1097 = vshrl.u32 %v1096, 7
        %v1098 = vsub.s32 %v1095, %v1097
        %v1099 = vrot.slane %v1085, %v1098
        %v1100 = vcombine.low %v1075, %v1083
        %v1101 = vcombine.high %v1075, %v1083
        %v1103 = vunpack.c.l.s4 1934713408
        %v1104 = vunpack.c.0.s8 %v1103
        %v1105 = vlaneseq
        %v1106 = vshrl.u32 %v1105, 7
        %v1107 = vsub.s32 %v1104, %v1106
        %v1108 = vrot.slane %v1100, %v1107
        %v1110 = vunpack.c.l.s4 1934713408
        %v1111 = vunpack.c.0.s8 %v1110
        %v1112 = vlaneseq
        %v1113 = vshrl.u32 %v1112, 7
        %v1114 = vsub.s32 %v1111, %v1113
        %v1115 = vrot.slane %v1101, %v1114
        %v1116 = vcombine.low %v1092, %v1108
        %v1117 = vcombine.high %v1092, %v1108
        %v1118 = vcombine.low %v1099, %v1115
        %v1119 = vcombine.high %v1099, %v1115
        %1121 = vrot.lane.b32.xlu0 %v969, 120
        %v1122 = vpop.permute.xlu0 %1121
        %1124 = vrot.lane.b32.xlu0 %v969, 112
        %v1125 = vpop.permute.xlu0 %1124
        %1127 = vrot.lane.b32.xlu0 %v969, 104
        %v1128 = vpop.permute.xlu0 %1127
        %v1130 = vcombine.low %v969, %v1125
        %v1131 = vcombine.high %v969, %v1125
        %v1133 = vunpack.c.l.s4 1983009808
        %v1134 = vunpack.c.0.s8 %v1133
        %v1135 = vlaneseq
        %v1136 = vshrl.u32 %v1135, 7
        %v1137 = vsub.s32 %v1134, %v1136
        %v1138 = vrot.slane %v1130, %v1137
        %v1140 = vunpack.c.l.s4 1983009808
        %v1141 = vunpack.c.0.s8 %v1140
        %v1142 = vlaneseq
        %v1143 = vshrl.u32 %v1142, 7
        %v1144 = vsub.s32 %v1141, %v1143
        %v1145 = vrot.slane %v1131, %v1144
        %v1146 = vcombine.low %v1122, %v1128
        %v1147 = vcombine.high %v1122, %v1128
        %v1149 = vunpack.c.l.s4 1983009808
        %v1150 = vunpack.c.0.s8 %v1149
        %v1151 = vlaneseq
        %v1152 = vshrl.u32 %v1151, 7
        %v1153 = vsub.s32 %v1150, %v1152
        %v1154 = vrot.slane %v1146, %v1153
        %v1156 = vunpack.c.l.s4 1983009808
        %v1157 = vunpack.c.0.s8 %v1156
        %v1158 = vlaneseq
        %v1159 = vshrl.u32 %v1158, 7
        %v1160 = vsub.s32 %v1157, %v1159
        %v1161 = vrot.slane %v1147, %v1160
        %v1162 = vcombine.low %v1138, %v1154
        %v1163 = vcombine.high %v1138, %v1154
        %v1165 = vunpack.c.l.s4 1934713408
        %v1166 = vunpack.c.0.s8 %v1165
        %v1167 = vlaneseq
        %v1168 = vshrl.u32 %v1167, 7
        %v1169 = vsub.s32 %v1166, %v1168
        %v1170 = vrot.slane %v1162, %v1169
        %v1172 = vunpack.c.l.s4 1934713408
        %v1173 = vunpack.c.0.s8 %v1172
        %v1174 = vlaneseq
        %v1175 = vshrl.u32 %v1174, 7
        %v1176 = vsub.s32 %v1173, %v1175
        %v1177 = vrot.slane %v1163, %v1176
        %v1178 = vcombine.low %v1145, %v1161
        %v1179 = vcombine.high %v1145, %v1161
        %v1181 = vunpack.c.l.s4 1934713408
        %v1182 = vunpack.c.0.s8 %v1181
        %v1183 = vlaneseq
        %v1184 = vshrl.u32 %v1183, 7
        %v1185 = vsub.s32 %v1182, %v1184
        %v1186 = vrot.slane %v1178, %v1185
        %v1188 = vunpack.c.l.s4 1934713408
        %v1189 = vunpack.c.0.s8 %v1188
        %v1190 = vlaneseq
        %v1191 = vshrl.u32 %v1190, 7
        %v1192 = vsub.s32 %v1189, %v1191
        %v1193 = vrot.slane %v1179, %v1192
        %v1194 = vcombine.high %v1170, 0.0
        %v1195 = vcombine.high %v1177, 0.0
        %v1196 = vcombine.high %v1186, 0.0
        %v1197 = vcombine.high %v1193, 0.0
        %v1198 = vcombine.low %v1170, %v1177
        %v1200 = vunpack.c.l.s4 1983009808
        %v1201 = vunpack.c.0.s8 %v1200
        %v1202 = vlaneseq
        %v1203 = vshrl.u32 %v1202, 7
        %v1204 = vsub.s32 %v1201, %v1203
        %v1205 = vrot.slane %v1198, %v1204
        %v1206 = vcombine.low %v1194, %v1195
        %v1208 = vunpack.c.l.s4 1983009808
        %v1209 = vunpack.c.0.s8 %v1208
        %v1210 = vlaneseq
        %v1211 = vshrl.u32 %v1210, 7
        %v1212 = vsub.s32 %v1209, %v1211
        %v1213 = vrot.slane %v1206, %v1212
        %v1214 = vcombine.low %v1186, %v1193
        %v1216 = vunpack.c.l.s4 1983009808
        %v1217 = vunpack.c.0.s8 %v1216
        %v1218 = vlaneseq
        %v1219 = vshrl.u32 %v1218, 7
        %v1220 = vsub.s32 %v1217, %v1219
        %v1221 = vrot.slane %v1214, %v1220
        %v1222 = vcombine.low %v1196, %v1197
        %v1224 = vunpack.c.l.s4 1983009808
        %v1225 = vunpack.c.0.s8 %v1224
        %v1226 = vlaneseq
        %v1227 = vshrl.u32 %v1226, 7
        %v1228 = vsub.s32 %v1225, %v1227
        %v1229 = vrot.slane %v1222, %v1228
        %v1230 = vcombine.low %v1205, %v1213
        %v1231 = vcombine.high %v1205, %v1213
        %v1233 = vunpack.c.l.s4 1934713408
        %v1234 = vunpack.c.0.s8 %v1233
        %v1235 = vlaneseq
        %v1236 = vshrl.u32 %v1235, 7
        %v1237 = vsub.s32 %v1234, %v1236
        %v1238 = vrot.slane %v1230, %v1237
        %v1240 = vunpack.c.l.s4 1934713408
        %v1241 = vunpack.c.0.s8 %v1240
        %v1242 = vlaneseq
        %v1243 = vshrl.u32 %v1242, 7
        %v1244 = vsub.s32 %v1241, %v1243
        %v1245 = vrot.slane %v1231, %v1244
        %v1246 = vcombine.low %v1221, %v1229
        %v1247 = vcombine.high %v1221, %v1229
        %v1249 = vunpack.c.l.s4 1934713408
        %v1250 = vunpack.c.0.s8 %v1249
        %v1251 = vlaneseq
        %v1252 = vshrl.u32 %v1251, 7
        %v1253 = vsub.s32 %v1250, %v1252
        %v1254 = vrot.slane %v1246, %v1253
        %v1256 = vunpack.c.l.s4 1934713408
        %v1257 = vunpack.c.0.s8 %v1256
        %v1258 = vlaneseq
        %v1259 = vshrl.u32 %v1258, 7
        %v1260 = vsub.s32 %v1257, %v1259
        %v1261 = vrot.slane %v1247, %v1260
        %v1262 = vcombine.low %v1238, %v1254
        %v1263 = vcombine.high %v1238, %v1254
        %v1264 = vcombine.low %v1245, %v1261
        %v1265 = vcombine.high %v1245, %v1261
        %1266 = vrot.lane.b32.xlu0 %v969, 96
        %v1267 = vpop.permute.xlu0 %1266
        %1268 = vrot.lane.b32.xlu0 %v1122, 96
        %v1269 = vpop.permute.xlu0 %1268
        %1270 = vrot.lane.b32.xlu0 %v1125, 96
        %v1271 = vpop.permute.xlu0 %1270
        %1272 = vrot.lane.b32.xlu0 %v1128, 96
        %v1273 = vpop.permute.xlu0 %1272
        %v1278 = vcombine.low %v1267, %v1271
        %v1279 = vcombine.high %v1267, %v1271
        %v1281 = vunpack.c.l.s4 1983009808
        %v1282 = vunpack.c.0.s8 %v1281
        %v1283 = vlaneseq
        %v1284 = vshrl.u32 %v1283, 7
        %v1285 = vsub.s32 %v1282, %v1284
        %v1286 = vrot.slane %v1278, %v1285
        %v1288 = vunpack.c.l.s4 1983009808
        %v1289 = vunpack.c.0.s8 %v1288
        %v1290 = vlaneseq
        %v1291 = vshrl.u32 %v1290, 7
        %v1292 = vsub.s32 %v1289, %v1291
        %v1293 = vrot.slane %v1279, %v1292
        %v1294 = vcombine.low %v1269, %v1273
        %v1295 = vcombine.high %v1269, %v1273
        %v1297 = vunpack.c.l.s4 1983009808
        %v1298 = vunpack.c.0.s8 %v1297
        %v1299 = vlaneseq
        %v1300 = vshrl.u32 %v1299, 7
        %v1301 = vsub.s32 %v1298, %v1300
        %v1302 = vrot.slane %v1294, %v1301
        %v1304 = vunpack.c.l.s4 1983009808
        %v1305 = vunpack.c.0.s8 %v1304
        %v1306 = vlaneseq
        %v1307 = vshrl.u32 %v1306, 7
        %v1308 = vsub.s32 %v1305, %v1307
        %v1309 = vrot.slane %v1295, %v1308
        %v1310 = vcombine.low %v1286, %v1302
        %v1311 = vcombine.high %v1286, %v1302
        %v1313 = vunpack.c.l.s4 1934713408
        %v1314 = vunpack.c.0.s8 %v1313
        %v1315 = vlaneseq
        %v1316 = vshrl.u32 %v1315, 7
        %v1317 = vsub.s32 %v1314, %v1316
        %v1318 = vrot.slane %v1310, %v1317
        %v1320 = vunpack.c.l.s4 1934713408
        %v1321 = vunpack.c.0.s8 %v1320
        %v1322 = vlaneseq
        %v1323 = vshrl.u32 %v1322, 7
        %v1324 = vsub.s32 %v1321, %v1323
        %v1325 = vrot.slane %v1311, %v1324
        %v1326 = vcombine.low %v1293, %v1309
        %v1327 = vcombine.high %v1293, %v1309
        %v1329 = vunpack.c.l.s4 1934713408
        %v1330 = vunpack.c.0.s8 %v1329
        %v1331 = vlaneseq
        %v1332 = vshrl.u32 %v1331, 7
        %v1333 = vsub.s32 %v1330, %v1332
        %v1334 = vrot.slane %v1326, %v1333
        %v1336 = vunpack.c.l.s4 1934713408
        %v1337 = vunpack.c.0.s8 %v1336
        %v1338 = vlaneseq
        %v1339 = vshrl.u32 %v1338, 7
        %v1340 = vsub.s32 %v1337, %v1339
        %v1341 = vrot.slane %v1327, %v1340
        %v1342 = vcombine.high %v1318, 0.0
        %v1343 = vcombine.high %v1325, 0.0
        %v1344 = vcombine.high %v1334, 0.0
        %v1345 = vcombine.high %v1341, 0.0
        %v1346 = vcombine.low %v1318, %v1325
        %v1348 = vunpack.c.l.s4 1983009808
        %v1349 = vunpack.c.0.s8 %v1348
        %v1350 = vlaneseq
        %v1351 = vshrl.u32 %v1350, 7
        %v1352 = vsub.s32 %v1349, %v1351
        %v1353 = vrot.slane %v1346, %v1352
        %v1354 = vcombine.low %v1342, %v1343
        %v1356 = vunpack.c.l.s4 1983009808
        %v1357 = vunpack.c.0.s8 %v1356
        %v1358 = vlaneseq
        %v1359 = vshrl.u32 %v1358, 7
        %v1360 = vsub.s32 %v1357, %v1359
        %v1361 = vrot.slane %v1354, %v1360
        %v1362 = vcombine.low %v1334, %v1341
        %v1364 = vunpack.c.l.s4 1983009808
        %v1365 = vunpack.c.0.s8 %v1364
        %v1366 = vlaneseq
        %v1367 = vshrl.u32 %v1366, 7
        %v1368 = vsub.s32 %v1365, %v1367
        %v1369 = vrot.slane %v1362, %v1368
        %v1370 = vcombine.low %v1344, %v1345
        %v1372 = vunpack.c.l.s4 1983009808
        %v1373 = vunpack.c.0.s8 %v1372
        %v1374 = vlaneseq
        %v1375 = vshrl.u32 %v1374, 7
        %v1376 = vsub.s32 %v1373, %v1375
        %v1377 = vrot.slane %v1370, %v1376
        %v1378 = vcombine.low %v1353, %v1361
        %v1379 = vcombine.high %v1353, %v1361
        %v1381 = vunpack.c.l.s4 1934713408
        %v1382 = vunpack.c.0.s8 %v1381
        %v1383 = vlaneseq
        %v1384 = vshrl.u32 %v1383, 7
        %v1385 = vsub.s32 %v1382, %v1384
        %v1386 = vrot.slane %v1378, %v1385
        %v1388 = vunpack.c.l.s4 1934713408
        %v1389 = vunpack.c.0.s8 %v1388
        %v1390 = vlaneseq
        %v1391 = vshrl.u32 %v1390, 7
        %v1392 = vsub.s32 %v1389, %v1391
        %v1393 = vrot.slane %v1379, %v1392
        %v1394 = vcombine.low %v1369, %v1377
        %v1395 = vcombine.high %v1369, %v1377
        %v1397 = vunpack.c.l.s4 1934713408
        %v1398 = vunpack.c.0.s8 %v1397
        %v1399 = vlaneseq
        %v1400 = vshrl.u32 %v1399, 7
        %v1401 = vsub.s32 %v1398, %v1400
        %v1402 = vrot.slane %v1394, %v1401
        %v1404 = vunpack.c.l.s4 1934713408
        %v1405 = vunpack.c.0.s8 %v1404
        %v1406 = vlaneseq
        %v1407 = vshrl.u32 %v1406, 7
        %v1408 = vsub.s32 %v1405, %v1407
        %v1409 = vrot.slane %v1395, %v1408
        %v1410 = vcombine.low %v1386, %v1402
        %v1411 = vcombine.high %v1386, %v1402
        %v1412 = vcombine.low %v1393, %v1409
        %v1413 = vcombine.high %v1393, %v1409
        %v1414 = vpack.c.bf16 %v1116, %v1116
        %v1415 = vpack.c.bf16 %v1117, %v1117
        %v1416 = vpack.c.bf16 %v1118, %v1118
        %v1417 = vpack.c.bf16 %v1119, %v1119
        %v1418 = vpack.c.bf16 %v1262, %v1262
        %v1419 = vpack.c.bf16 %v1263, %v1263
        %v1420 = vpack.c.bf16 %v1264, %v1264
        %v1421 = vpack.c.bf16 %v1265, %v1265
        %vm1422 = vcmask 64512
        %v1424 = vsel %vm1422, %v1414, 0
        %v1427 = vsel %vm1422, %v1418, 0
        %1429 = vmatprep.subr.bf16.mxu0 0
        %1430 = vmatpush1.bf16.xpose.msra.mxu0 %v1427
        %1431 = vmatprep.subr.bf16.mxu0 0
        %1432 = vmatpush1.bf16.xpose.msra.mxu0 0
        %1433 = vmatprep.subr.bf16.mxu0 0
        %1434 = vmatpush1.bf16.xpose.msra.mxu0 0
        %1435 = vmatprep.subr.bf16.mxu0 0
        %1436 = vmatpush1.bf16.xpose.msra.mxu0 0
        %1437 = vmatprep.subr.bf16.mxu0 0
        %1438 = vmatpush1.bf16.xpose.msra.mxu0 0
        %1439 = vmatprep.subr.bf16.mxu0 0
        %1440 = vmatpush1.bf16.xpose.msra.mxu0 0
        %1441 = vmatprep.subr.bf16.mxu0 0
        %1442 = vmatpush1.bf16.xpose.msra.mxu0 0
        %1443 = vmatprep.subr.bf16.mxu0 0
        %1444 = vmatpush1.bf16.xpose.msra.mxu0 0
        %1445 = vmatprep.subr.bf16.mxu0 0
        %1446 = vmatpush1.bf16.xpose.msra.mxu0 0
        %1447 = vmatprep.subr.bf16.mxu0 0
        %1448 = vmatpush1.bf16.xpose.msra.mxu0 0
        %1449 = vmatprep.subr.bf16.mxu0 0
        %1450 = vmatpush1.bf16.xpose.msra.mxu0 0
        %1451 = vmatprep.subr.bf16.mxu0 0
        %1452 = vmatpush1.bf16.xpose.msra.mxu0 0
        %1453 = vmatprep.subr.bf16.mxu0 0
        %1454 = vmatpush1.bf16.xpose.msra.mxu0 0
        %1455 = vmatprep.subr.bf16.mxu0 0
        %1456 = vmatpush1.bf16.xpose.msra.mxu0 0
        %1457 = vmatprep.subr.bf16.mxu0 0
        %1458 = vmatpush1.bf16.xpose.msra.mxu0 0
        %1459 = vmatprep.subr.bf16.mxu0 0
        %1460 = vmatpush1.bf16.xpose.msra.mxu0 0
        %1461 = vmatprep.mubr.bf16.mxu0 0
        %1462 = vmatmul.mubr.bf16.gmra.mrb[0].mxu0 %v1424
        %v1463 = vpop.f32.mrb[0].mxu0
        %v1464 = vadd.f32 0.0, %v1463
        %v1465 = vpop.f32.mrb[0].mxu0
        %v1466 = vpop.f32.mrb[0].mxu0
        %v1467 = vpop.f32.mrb[0].mxu0
        %1468 = vdwg.mxu0
        %v1470 = vsel %vm1422, %v1415, 0
        %v1473 = vsel %vm1422, %v1419, 0
        %1475 = vmatprep.subr.bf16.mxu0 0
        %1476 = vmatpush1.bf16.xpose.msra.mxu0 %v1473
        %1477 = vmatprep.subr.bf16.mxu0 0
        %1478 = vmatpush1.bf16.xpose.msra.mxu0 0
        %1479 = vmatprep.subr.bf16.mxu0 0
        %1480 = vmatpush1.bf16.xpose.msra.mxu0 0
        %1481 = vmatprep.subr.bf16.mxu0 0
        %1482 = vmatpush1.bf16.xpose.msra.mxu0 0
        %1483 = vmatprep.subr.bf16.mxu0 0
        %1484 = vmatpush1.bf16.xpose.msra.mxu0 0
        %1485 = vmatprep.subr.bf16.mxu0 0
        %1486 = vmatpush1.bf16.xpose.msra.mxu0 0
        %1487 = vmatprep.subr.bf16.mxu0 0
        %1488 = vmatpush1.bf16.xpose.msra.mxu0 0
        %1489 = vmatprep.subr.bf16.mxu0 0
        %1490 = vmatpush1.bf16.xpose.msra.mxu0 0
        %1491 = vmatprep.subr.bf16.mxu0 0
        %1492 = vmatpush1.bf16.xpose.msra.mxu0 0
        %1493 = vmatprep.subr.bf16.mxu0 0
        %1494 = vmatpush1.bf16.xpose.msra.mxu0 0
        %1495 = vmatprep.subr.bf16.mxu0 0
        %1496 = vmatpush1.bf16.xpose.msra.mxu0 0
        %1497 = vmatprep.subr.bf16.mxu0 0
        %1498 = vmatpush1.bf16.xpose.msra.mxu0 0
        %1499 = vmatprep.subr.bf16.mxu0 0
        %1500 = vmatpush1.bf16.xpose.msra.mxu0 0
        %1501 = vmatprep.subr.bf16.mxu0 0
        %1502 = vmatpush1.bf16.xpose.msra.mxu0 0
        %1503 = vmatprep.subr.bf16.mxu0 0
        %1504 = vmatpush1.bf16.xpose.msra.mxu0 0
        %1505 = vmatprep.subr.bf16.mxu0 0
        %1506 = vmatpush1.bf16.xpose.msra.mxu0 0
        %1507 = vmatprep.mubr.bf16.mxu0 0
        %1508 = vmatmul.mubr.bf16.gmra.mrb[0].mxu0 %v1470
        %v1509 = vpop.f32.mrb[0].mxu0
        %v1510 = vadd.f32 0.0, %v1509
        %v1511 = vpop.f32.mrb[0].mxu0
        %v1512 = vpop.f32.mrb[0].mxu0
        %v1513 = vpop.f32.mrb[0].mxu0
        %1514 = vdwg.mxu0
        %v1516 = vsel %vm1422, %v1416, 0
        %v1519 = vsel %vm1422, %v1420, 0
        %1521 = vmatprep.subr.bf16.mxu0 0
        %1522 = vmatpush1.bf16.xpose.msra.mxu0 %v1519
        %1523 = vmatprep.subr.bf16.mxu0 0
        %1524 = vmatpush1.bf16.xpose.msra.mxu0 0
        %1525 = vmatprep.subr.bf16.mxu0 0
        %1526 = vmatpush1.bf16.xpose.msra.mxu0 0
        %1527 = vmatprep.subr.bf16.mxu0 0
        %1528 = vmatpush1.bf16.xpose.msra.mxu0 0
        %1529 = vmatprep.subr.bf16.mxu0 0
        %1530 = vmatpush1.bf16.xpose.msra.mxu0 0
        %1531 = vmatprep.subr.bf16.mxu0 0
        %1532 = vmatpush1.bf16.xpose.msra.mxu0 0
        %1533 = vmatprep.subr.bf16.mxu0 0
        %1534 = vmatpush1.bf16.xpose.msra.mxu0 0
        %1535 = vmatprep.subr.bf16.mxu0 0
        %1536 = vmatpush1.bf16.xpose.msra.mxu0 0
        %1537 = vmatprep.subr.bf16.mxu0 0
        %1538 = vmatpush1.bf16.xpose.msra.mxu0 0
        %1539 = vmatprep.subr.bf16.mxu0 0
        %1540 = vmatpush1.bf16.xpose.msra.mxu0 0
        %1541 = vmatprep.subr.bf16.mxu0 0
        %1542 = vmatpush1.bf16.xpose.msra.mxu0 0
        %1543 = vmatprep.subr.bf16.mxu0 0
        %1544 = vmatpush1.bf16.xpose.msra.mxu0 0
        %1545 = vmatprep.subr.bf16.mxu0 0
        %1546 = vmatpush1.bf16.xpose.msra.mxu0 0
        %1547 = vmatprep.subr.bf16.mxu0 0
        %1548 = vmatpush1.bf16.xpose.msra.mxu0 0
        %1549 = vmatprep.subr.bf16.mxu0 0
        %1550 = vmatpush1.bf16.xpose.msra.mxu0 0
        %1551 = vmatprep.subr.bf16.mxu0 0
        %1552 = vmatpush1.bf16.xpose.msra.mxu0 0
        %1553 = vmatprep.mubr.bf16.mxu0 0
        %1554 = vmatmul.mubr.bf16.gmra.mrb[0].mxu0 %v1516
        %v1555 = vpop.f32.mrb[0].mxu0
        %v1556 = vadd.f32 0.0, %v1555
        %v1557 = vpop.f32.mrb[0].mxu0
        %v1558 = vpop.f32.mrb[0].mxu0
        %v1559 = vpop.f32.mrb[0].mxu0
        %1560 = vdwg.mxu0
        %v1562 = vsel %vm1422, %v1417, 0
        %v1565 = vsel %vm1422, %v1421, 0
        %1567 = vmatprep.subr.bf16.mxu0 0
        %1568 = vmatpush1.bf16.xpose.msra.mxu0 %v1565
        %1569 = vmatprep.subr.bf16.mxu0 0
        %1570 = vmatpush1.bf16.xpose.msra.mxu0 0
        %1571 = vmatprep.subr.bf16.mxu0 0
        %1572 = vmatpush1.bf16.xpose.msra.mxu0 0
        %1573 = vmatprep.subr.bf16.mxu0 0
        %1574 = vmatpush1.bf16.xpose.msra.mxu0 0
        %1575 = vmatprep.subr.bf16.mxu0 0
        %1576 = vmatpush1.bf16.xpose.msra.mxu0 0
        %1577 = vmatprep.subr.bf16.mxu0 0
        %1578 = vmatpush1.bf16.xpose.msra.mxu0 0
        %1579 = vmatprep.subr.bf16.mxu0 0
        %1580 = vmatpush1.bf16.xpose.msra.mxu0 0
        %1581 = vmatprep.subr.bf16.mxu0 0
        %1582 = vmatpush1.bf16.xpose.msra.mxu0 0
        %1583 = vmatprep.subr.bf16.mxu0 0
        %1584 = vmatpush1.bf16.xpose.msra.mxu0 0
        %1585 = vmatprep.subr.bf16.mxu0 0
        %1586 = vmatpush1.bf16.xpose.msra.mxu0 0
        %1587 = vmatprep.subr.bf16.mxu0 0
        %1588 = vmatpush1.bf16.xpose.msra.mxu0 0
        %1589 = vmatprep.subr.bf16.mxu0 0
        %1590 = vmatpush1.bf16.xpose.msra.mxu0 0
        %1591 = vmatprep.subr.bf16.mxu0 0
        %1592 = vmatpush1.bf16.xpose.msra.mxu0 0
        %1593 = vmatprep.subr.bf16.mxu0 0
        %1594 = vmatpush1.bf16.xpose.msra.mxu0 0
        %1595 = vmatprep.subr.bf16.mxu0 0
        %1596 = vmatpush1.bf16.xpose.msra.mxu0 0
        %1597 = vmatprep.subr.bf16.mxu0 0
        %1598 = vmatpush1.bf16.xpose.msra.mxu0 0
        %1599 = vmatprep.mubr.bf16.mxu0 0
        %1600 = vmatmul.mubr.bf16.gmra.mrb[0].mxu0 %v1562
        %v1601 = vpop.f32.mrb[0].mxu0
        %v1602 = vadd.f32 0.0, %v1601
        %v1603 = vpop.f32.mrb[0].mxu0
        %v1604 = vpop.f32.mrb[0].mxu0
        %v1605 = vpop.f32.mrb[0].mxu0
        %1606 = vdwg.mxu0
        %v1607 = vsel %vm1422, %v1464, -inf
        %1608 = vmax.xlane.f32.xlu0 %v1607
        %v1609 = vpop.xlane.xlu0 %1608
        %v1610 = vsel %vm1422, %v1510, -inf
        %1611 = vmax.xlane.f32.xlu0 %v1610
        %v1612 = vpop.xlane.xlu0 %1611
        %v1613 = vsel %vm1422, %v1556, -inf
        %1614 = vmax.xlane.f32.xlu0 %v1613
        %v1615 = vpop.xlane.xlu0 %1614
        %v1616 = vsel %vm1422, %v1602, -inf
        %1617 = vmax.xlane.f32.xlu0 %v1616
        %v1618 = vpop.xlane.xlu0 %1617
        %v1619 = vsub.f32 %v1464, %v1609
        %v1620 = vsub.f32 %v1510, %v1612
        %v1621 = vsub.f32 %v1556, %v1615
        %v1622 = vsub.f32 %v1602, %v1618
        %v1623 = vmul.f32 %v1619, 1.442695
        %v1624 = vpow.pop %v1623
        %v1625 = vmul.f32 %v1620, 1.442695
        %v1626 = vpow.pop %v1625
        %v1627 = vmul.f32 %v1621, 1.442695
        %v1628 = vpow.pop %v1627
        %v1629 = vmul.f32 %v1622, 1.442695
        %v1630 = vpow.pop %v1629
        %v1631 = vsel %vm1422, %v1624, 0.0
        %1632 = vadd.xlane.f32.xlu0 %v1631
        %v1633 = vpop.xlane.xlu0 %1632
        %v1634 = vsel %vm1422, %v1626, 0.0
        %1635 = vadd.xlane.f32.xlu0 %v1634
        %v1636 = vpop.xlane.xlu0 %1635
        %v1637 = vsel %vm1422, %v1628, 0.0
        %1638 = vadd.xlane.f32.xlu0 %v1637
        %v1639 = vpop.xlane.xlu0 %1638
        %v1640 = vsel %vm1422, %v1630, 0.0
        %1641 = vadd.xlane.f32.xlu0 %v1640
        %v1642 = vpop.xlane.xlu0 %1641
        %v1643 = vrcp.pop %v1633
        %v1644 = vrcp.pop %v1636
        %v1645 = vrcp.pop %v1639
        %v1646 = vrcp.pop %v1642
        %v1647 = vmul.f32 %v1624, %v1643
        %v1648 = vmul.f32 %v1626, %v1644
        %v1649 = vmul.f32 %v1628, %v1645
        %v1650 = vmul.f32 %v1630, %v1646
        %v1651 = vpack.c.bf16 %v1647, %v1647
        %v1652 = vpack.c.bf16 %v1648, %v1648
        %v1653 = vpack.c.bf16 %v1649, %v1649
        %v1654 = vpack.c.bf16 %v1650, %v1650
        %v1655 = vpack.c.bf16 %v1410, %v1410
        %v1656 = vpack.c.bf16 %v1411, %v1411
        %v1657 = vpack.c.bf16 %v1412, %v1412
        %v1658 = vpack.c.bf16 %v1413, %v1413
        %v1660 = vsel %vm1422, %v1651, 0
        %vm1662 = vcmask 1043456
        %v1664 = vsel %vm1662, %v1655, 0
        %1666 = vmatprep.subr.bf16.mxu0 0
        %1667 = vmatpush1.bf16.msra.mxu0 %v1664
        %1668 = vmatprep.subr.bf16.mxu0 0
        %1669 = vmatpush1.bf16.msra.mxu0 0
        %1670 = vmatprep.subr.bf16.mxu0 0
        %1671 = vmatpush1.bf16.msra.mxu0 0
        %1672 = vmatprep.subr.bf16.mxu0 0
        %1673 = vmatpush1.bf16.msra.mxu0 0
        %1674 = vmatprep.subr.bf16.mxu0 0
        %1675 = vmatpush1.bf16.msra.mxu0 0
        %1676 = vmatprep.subr.bf16.mxu0 0
        %1677 = vmatpush1.bf16.msra.mxu0 0
        %1678 = vmatprep.subr.bf16.mxu0 0
        %1679 = vmatpush1.bf16.msra.mxu0 0
        %1680 = vmatprep.subr.bf16.mxu0 0
        %1681 = vmatpush1.bf16.msra.mxu0 0
        %1682 = vmatprep.subr.bf16.mxu0 0
        %1683 = vmatpush1.bf16.msra.mxu0 0
        %1684 = vmatprep.subr.bf16.mxu0 0
        %1685 = vmatpush1.bf16.msra.mxu0 0
        %1686 = vmatprep.subr.bf16.mxu0 0
        %1687 = vmatpush1.bf16.msra.mxu0 0
        %1688 = vmatprep.subr.bf16.mxu0 0
        %1689 = vmatpush1.bf16.msra.mxu0 0
        %1690 = vmatprep.subr.bf16.mxu0 0
        %1691 = vmatpush1.bf16.msra.mxu0 0
        %1692 = vmatprep.subr.bf16.mxu0 0
        %1693 = vmatpush1.bf16.msra.mxu0 0
        %1694 = vmatprep.subr.bf16.mxu0 0
        %1695 = vmatpush1.bf16.msra.mxu0 0
        %1696 = vmatprep.subr.bf16.mxu0 0
        %1697 = vmatpush1.bf16.msra.mxu0 0
        %1698 = vmatprep.mubr.bf16.mxu0 0
        %1699 = vmatmul.mubr.bf16.gmra.mrb[0].mxu0 %v1660
        %v1700 = vpop.f32.mrb[0].mxu0
        %v1701 = vadd.f32 0.0, %v1700
        %v1702 = vpop.f32.mrb[0].mxu0
        %v1703 = vpop.f32.mrb[0].mxu0
        %v1704 = vpop.f32.mrb[0].mxu0
        %1705 = vdwg.mxu0
        %v1707 = vsel %vm1422, %v1652, 0
        %v1710 = vsel %vm1662, %v1656, 0
        %1712 = vmatprep.subr.bf16.mxu0 0
        %1713 = vmatpush1.bf16.msra.mxu0 %v1710
        %1714 = vmatprep.subr.bf16.mxu0 0
        %1715 = vmatpush1.bf16.msra.mxu0 0
        %1716 = vmatprep.subr.bf16.mxu0 0
        %1717 = vmatpush1.bf16.msra.mxu0 0
        %1718 = vmatprep.subr.bf16.mxu0 0
        %1719 = vmatpush1.bf16.msra.mxu0 0
        %1720 = vmatprep.subr.bf16.mxu0 0
        %1721 = vmatpush1.bf16.msra.mxu0 0
        %1722 = vmatprep.subr.bf16.mxu0 0
        %1723 = vmatpush1.bf16.msra.mxu0 0
        %1724 = vmatprep.subr.bf16.mxu0 0
        %1725 = vmatpush1.bf16.msra.mxu0 0
        %1726 = vmatprep.subr.bf16.mxu0 0
        %1727 = vmatpush1.bf16.msra.mxu0 0
        %1728 = vmatprep.subr.bf16.mxu0 0
        %1729 = vmatpush1.bf16.msra.mxu0 0
        %1730 = vmatprep.subr.bf16.mxu0 0
        %1731 = vmatpush1.bf16.msra.mxu0 0
        %1732 = vmatprep.subr.bf16.mxu0 0
        %1733 = vmatpush1.bf16.msra.mxu0 0
        %1734 = vmatprep.subr.bf16.mxu0 0
        %1735 = vmatpush1.bf16.msra.mxu0 0
        %1736 = vmatprep.subr.bf16.mxu0 0
        %1737 = vmatpush1.bf16.msra.mxu0 0
        %1738 = vmatprep.subr.bf16.mxu0 0
        %1739 = vmatpush1.bf16.msra.mxu0 0
        %1740 = vmatprep.subr.bf16.mxu0 0
        %1741 = vmatpush1.bf16.msra.mxu0 0
        %1742 = vmatprep.subr.bf16.mxu0 0
        %1743 = vmatpush1.bf16.msra.mxu0 0
        %1744 = vmatprep.mubr.bf16.mxu0 0
        %1745 = vmatmul.mubr.bf16.gmra.mrb[0].mxu0 %v1707
        %v1746 = vpop.f32.mrb[0].mxu0
        %v1747 = vadd.f32 0.0, %v1746
        %v1748 = vpop.f32.mrb[0].mxu0
        %v1749 = vpop.f32.mrb[0].mxu0
        %v1750 = vpop.f32.mrb[0].mxu0
        %1751 = vdwg.mxu0
        %v1753 = vsel %vm1422, %v1653, 0
        %v1756 = vsel %vm1662, %v1657, 0
        %1758 = vmatprep.subr.bf16.mxu0 0
        %1759 = vmatpush1.bf16.msra.mxu0 %v1756
        %1760 = vmatprep.subr.bf16.mxu0 0
        %1761 = vmatpush1.bf16.msra.mxu0 0
        %1762 = vmatprep.subr.bf16.mxu0 0
        %1763 = vmatpush1.bf16.msra.mxu0 0
        %1764 = vmatprep.subr.bf16.mxu0 0
        %1765 = vmatpush1.bf16.msra.mxu0 0
        %1766 = vmatprep.subr.bf16.mxu0 0
        %1767 = vmatpush1.bf16.msra.mxu0 0
        %1768 = vmatprep.subr.bf16.mxu0 0
        %1769 = vmatpush1.bf16.msra.mxu0 0
        %1770 = vmatprep.subr.bf16.mxu0 0
        %1771 = vmatpush1.bf16.msra.mxu0 0
        %1772 = vmatprep.subr.bf16.mxu0 0
        %1773 = vmatpush1.bf16.msra.mxu0 0
        %1774 = vmatprep.subr.bf16.mxu0 0
        %1775 = vmatpush1.bf16.msra.mxu0 0
        %1776 = vmatprep.subr.bf16.mxu0 0
        %1777 = vmatpush1.bf16.msra.mxu0 0
        %1778 = vmatprep.subr.bf16.mxu0 0
        %1779 = vmatpush1.bf16.msra.mxu0 0
        %1780 = vmatprep.subr.bf16.mxu0 0
        %1781 = vmatpush1.bf16.msra.mxu0 0
        %1782 = vmatprep.subr.bf16.mxu0 0
        %1783 = vmatpush1.bf16.msra.mxu0 0
        %1784 = vmatprep.subr.bf16.mxu0 0
        %1785 = vmatpush1.bf16.msra.mxu0 0
        %1786 = vmatprep.subr.bf16.mxu0 0
        %1787 = vmatpush1.bf16.msra.mxu0 0
        %1788 = vmatprep.subr.bf16.mxu0 0
        %1789 = vmatpush1.bf16.msra.mxu0 0
        %1790 = vmatprep.mubr.bf16.mxu0 0
        %1791 = vmatmul.mubr.bf16.gmra.mrb[0].mxu0 %v1753
        %v1792 = vpop.f32.mrb[0].mxu0
        %v1793 = vadd.f32 0.0, %v1792
        %v1794 = vpop.f32.mrb[0].mxu0
        %v1795 = vpop.f32.mrb[0].mxu0
        %v1796 = vpop.f32.mrb[0].mxu0
        %1797 = vdwg.mxu0
        %v1799 = vsel %vm1422, %v1654, 0
        %v1802 = vsel %vm1662, %v1658, 0
        %1804 = vmatprep.subr.bf16.mxu0 0
        %1805 = vmatpush1.bf16.msra.mxu0 %v1802
        %1806 = vmatprep.subr.bf16.mxu0 0
        %1807 = vmatpush1.bf16.msra.mxu0 0
        %1808 = vmatprep.subr.bf16.mxu0 0
        %1809 = vmatpush1.bf16.msra.mxu0 0
        %1810 = vmatprep.subr.bf16.mxu0 0
        %1811 = vmatpush1.bf16.msra.mxu0 0
        %1812 = vmatprep.subr.bf16.mxu0 0
        %1813 = vmatpush1.bf16.msra.mxu0 0
        %1814 = vmatprep.subr.bf16.mxu0 0
        %1815 = vmatpush1.bf16.msra.mxu0 0
        %1816 = vmatprep.subr.bf16.mxu0 0
        %1817 = vmatpush1.bf16.msra.mxu0 0
        %1818 = vmatprep.subr.bf16.mxu0 0
        %1819 = vmatpush1.bf16.msra.mxu0 0
        %1820 = vmatprep.subr.bf16.mxu0 0
        %1821 = vmatpush1.bf16.msra.mxu0 0
        %1822 = vmatprep.subr.bf16.mxu0 0
        %1823 = vmatpush1.bf16.msra.mxu0 0
        %1824 = vmatprep.subr.bf16.mxu0 0
        %1825 = vmatpush1.bf16.msra.mxu0 0
        %1826 = vmatprep.subr.bf16.mxu0 0
        %1827 = vmatpush1.bf16.msra.mxu0 0
        %1828 = vmatprep.subr.bf16.mxu0 0
        %1829 = vmatpush1.bf16.msra.mxu0 0
        %1830 = vmatprep.subr.bf16.mxu0 0
        %1831 = vmatpush1.bf16.msra.mxu0 0
        %1832 = vmatprep.subr.bf16.mxu0 0
        %1833 = vmatpush1.bf16.msra.mxu0 0
        %1834 = vmatprep.subr.bf16.mxu0 0
        %1835 = vmatpush1.bf16.msra.mxu0 0
        %1836 = vmatprep.mubr.bf16.mxu0 0
        %1837 = vmatmul.mubr.bf16.gmra.mrb[0].mxu0 %v1799
        %v1838 = vpop.f32.mrb[0].mxu0
        %v1839 = vadd.f32 0.0, %v1838
        %v1840 = vpop.f32.mrb[0].mxu0
        %v1841 = vpop.f32.mrb[0].mxu0
        %v1842 = vpop.f32.mrb[0].mxu0
        %1843 = vdwg.mxu0
        %v1844 = vcombine.low %v1701, %v1793
        %v1845 = vcombine.high %v1701, %v1793
        %v1847 = vunpack.c.l.s4 1983009808
        %v1848 = vunpack.c.0.s8 %v1847
        %v1849 = vlaneseq
        %v1850 = vshrl.u32 %v1849, 7
        %v1851 = vsub.s32 %v1848, %v1850
        %v1852 = vrot.slane %v1844, %v1851
        %v1854 = vunpack.c.l.s4 1983009808
        %v1855 = vunpack.c.0.s8 %v1854
        %v1856 = vlaneseq
        %v1857 = vshrl.u32 %v1856, 7
        %v1858 = vsub.s32 %v1855, %v1857
        %v1859 = vrot.slane %v1845, %v1858
        %v1860 = vcombine.low %v1747, %v1839
        %v1861 = vcombine.high %v1747, %v1839
        %v1863 = vunpack.c.l.s4 1983009808
        %v1864 = vunpack.c.0.s8 %v1863
        %v1865 = vlaneseq
        %v1866 = vshrl.u32 %v1865, 7
        %v1867 = vsub.s32 %v1864, %v1866
        %v1868 = vrot.slane %v1860, %v1867
        %v1870 = vunpack.c.l.s4 1983009808
        %v1871 = vunpack.c.0.s8 %v1870
        %v1872 = vlaneseq
        %v1873 = vshrl.u32 %v1872, 7
        %v1874 = vsub.s32 %v1871, %v1873
        %v1875 = vrot.slane %v1861, %v1874
        %v1876 = vcombine.low %v1852, %v1868
        %v1877 = vcombine.high %v1852, %v1868
        %v1879 = vunpack.c.l.s4 1934713408
        %v1880 = vunpack.c.0.s8 %v1879
        %v1881 = vlaneseq
        %v1882 = vshrl.u32 %v1881, 7
        %v1883 = vsub.s32 %v1880, %v1882
        %v1884 = vrot.slane %v1876, %v1883
        %v1886 = vunpack.c.l.s4 1934713408
        %v1887 = vunpack.c.0.s8 %v1886
        %v1888 = vlaneseq
        %v1889 = vshrl.u32 %v1888, 7
        %v1890 = vsub.s32 %v1887, %v1889
        %v1891 = vrot.slane %v1877, %v1890
        %v1892 = vcombine.low %v1859, %v1875
        %v1893 = vcombine.high %v1859, %v1875
        %v1895 = vunpack.c.l.s4 1934713408
        %v1896 = vunpack.c.0.s8 %v1895
        %v1897 = vlaneseq
        %v1898 = vshrl.u32 %v1897, 7
        %v1899 = vsub.s32 %v1896, %v1898
        %v1900 = vrot.slane %v1892, %v1899
        %v1902 = vunpack.c.l.s4 1934713408
        %v1903 = vunpack.c.0.s8 %v1902
        %v1904 = vlaneseq
        %v1905 = vshrl.u32 %v1904, 7
        %v1906 = vsub.s32 %v1903, %v1905
        %v1907 = vrot.slane %v1893, %v1906
        %v1908 = vcombine.high %v1884, 0.0
        %v1909 = vcombine.high %v1891, 0.0
        %v1910 = vcombine.high %v1900, 0.0
        %v1911 = vcombine.high %v1907, 0.0
        %v1912 = vcombine.low %v1884, %v1891
        %v1914 = vunpack.c.l.s4 1983009808
        %v1915 = vunpack.c.0.s8 %v1914
        %v1916 = vlaneseq
        %v1917 = vshrl.u32 %v1916, 7
        %v1918 = vsub.s32 %v1915, %v1917
        %v1919 = vrot.slane %v1912, %v1918
        %v1920 = vcombine.low %v1908, %v1909
        %v1922 = vunpack.c.l.s4 1983009808
        %v1923 = vunpack.c.0.s8 %v1922
        %v1924 = vlaneseq
        %v1925 = vshrl.u32 %v1924, 7
        %v1926 = vsub.s32 %v1923, %v1925
        %v1927 = vrot.slane %v1920, %v1926
        %v1928 = vcombine.low %v1900, %v1907
        %v1930 = vunpack.c.l.s4 1983009808
        %v1931 = vunpack.c.0.s8 %v1930
        %v1932 = vlaneseq
        %v1933 = vshrl.u32 %v1932, 7
        %v1934 = vsub.s32 %v1931, %v1933
        %v1935 = vrot.slane %v1928, %v1934
        %v1936 = vcombine.low %v1910, %v1911
        %v1938 = vunpack.c.l.s4 1983009808
        %v1939 = vunpack.c.0.s8 %v1938
        %v1940 = vlaneseq
        %v1941 = vshrl.u32 %v1940, 7
        %v1942 = vsub.s32 %v1939, %v1941
        %v1943 = vrot.slane %v1936, %v1942
        %v1944 = vcombine.low %v1919, %v1927
        %v1945 = vcombine.high %v1919, %v1927
        %v1947 = vunpack.c.l.s4 1934713408
        %v1948 = vunpack.c.0.s8 %v1947
        %v1949 = vlaneseq
        %v1950 = vshrl.u32 %v1949, 7
        %v1951 = vsub.s32 %v1948, %v1950
        %v1952 = vrot.slane %v1944, %v1951
        %v1954 = vunpack.c.l.s4 1934713408
        %v1955 = vunpack.c.0.s8 %v1954
        %v1956 = vlaneseq
        %v1957 = vshrl.u32 %v1956, 7
        %v1958 = vsub.s32 %v1955, %v1957
        %v1959 = vrot.slane %v1945, %v1958
        %v1960 = vcombine.low %v1935, %v1943
        %v1961 = vcombine.high %v1935, %v1943
        %v1963 = vunpack.c.l.s4 1934713408
        %v1964 = vunpack.c.0.s8 %v1963
        %v1965 = vlaneseq
        %v1966 = vshrl.u32 %v1965, 7
        %v1967 = vsub.s32 %v1964, %v1966
        %v1968 = vrot.slane %v1960, %v1967
        %v1970 = vunpack.c.l.s4 1934713408
        %v1971 = vunpack.c.0.s8 %v1970
        %v1972 = vlaneseq
        %v1973 = vshrl.u32 %v1972, 7
        %v1974 = vsub.s32 %v1971, %v1973
        %v1975 = vrot.slane %v1961, %v1974
        %v1976 = vcombine.low %v1952, %v1968
        %v1977 = vcombine.high %v1952, %v1968
        %v1978 = vcombine.low %v1959, %v1975
        %v1979 = vcombine.high %v1959, %v1975
        %1981 = vrot.lane.b32.xlu0 %v1977, 8
        %v1982 = vpop.permute.xlu0 %1981
        %1985 = vrot.lane.b32.xlu0 %v1978, 16
        %v1986 = vpop.permute.xlu0 %1985
        %1989 = vrot.lane.b32.xlu0 %v1979, 24
        %v1990 = vpop.permute.xlu0 %1989
        %v1992 = vsel %vm1422, %v1976, %v1982
        %vm1993 = vcmask 130048
        %v1994 = vsel %vm1993, %v1992, %v1986
        %vm1995 = vcmask 195584
        %v1996 = vsel %vm1995, %v1994, %v1990
        %v1997 = vpack.c.bf16 %v1996, %v1996
        %v1998 = vld [vmem:[%s802] sm:$0xf]
        %v1999 = vld [vmem:[%s802 + $0x4] sm:$0xf]
        %v2000 = vld [vmem:[%s802 + $0x8] sm:$0xf]
        %v2001 = vld [vmem:[%s802 + $0xc] sm:$0xf]
        %v2002 = vld [vmem:[%s805] sm:$0x1]
        %v2004 = vlaneseq
        %v2005 = vshrl.u32 %v2004, 7
        %v2006 = vsub.s32 0, %v2005
        %v2007 = vrot.slane %v2002, %v2006
        %v2013 = vunpack.c.l.b16 %v1998
        %v2014 = vunpack.c.l.b16 %v1999
        %v2015 = vunpack.c.l.b16 %v2000
        %v2016 = vunpack.c.l.b16 %v2001
        %v2017 = vpack.c.b16 %v2014, %v2013
        %v2018 = vpack.c.b16 %v2016, %v2015
        %v2022 = vsel %vm863, %v1997, 0
        %2024 = vmatprep.subr.bf16.mxu0 0
        %2025 = vmatpush1.bf16.msra.mxu0 %v2017
        %2026 = vmatprep.subr.bf16.mxu0 0
        %2027 = vmatpush1.bf16.msra.mxu0 %v2018
        %2028 = vmatprep.subr.bf16.mxu0 0
        %2029 = vmatpush1.bf16.msra.mxu0 0
        %2030 = vmatprep.subr.bf16.mxu0 0
        %2031 = vmatpush1.bf16.msra.mxu0 0
        %2032 = vmatprep.subr.bf16.mxu0 0
        %2033 = vmatpush1.bf16.msra.mxu0 0
        %2034 = vmatprep.subr.bf16.mxu0 0
        %2035 = vmatpush1.bf16.msra.mxu0 0
        %2036 = vmatprep.subr.bf16.mxu0 0
        %2037 = vmatpush1.bf16.msra.mxu0 0
        %2038 = vmatprep.subr.bf16.mxu0 0
        %2039 = vmatpush1.bf16.msra.mxu0 0
        %2040 = vmatprep.subr.bf16.mxu0 0
        %2041 = vmatpush1.bf16.msra.mxu0 0
        %2042 = vmatprep.subr.bf16.mxu0 0
        %2043 = vmatpush1.bf16.msra.mxu0 0
        %2044 = vmatprep.subr.bf16.mxu0 0
        %2045 = vmatpush1.bf16.msra.mxu0 0
        %2046 = vmatprep.subr.bf16.mxu0 0
        %2047 = vmatpush1.bf16.msra.mxu0 0
        %2048 = vmatprep.subr.bf16.mxu0 0
        %2049 = vmatpush1.bf16.msra.mxu0 0
        %2050 = vmatprep.subr.bf16.mxu0 0
        %2051 = vmatpush1.bf16.msra.mxu0 0
        %2052 = vmatprep.subr.bf16.mxu0 0
        %2053 = vmatpush1.bf16.msra.mxu0 0
        %2054 = vmatprep.subr.bf16.mxu0 0
        %2055 = vmatpush1.bf16.msra.mxu0 0
        %2056 = vmatprep.mubr.bf16.mxu0 0
        %2057 = vmatmul.mubr.bf16.gmra.mrb[0].mxu0 %v2022
        %v2058 = vpop.f32.mrb[0].mxu0
        %v2059 = vadd.f32 %v2007, %v2058
        %v2060 = vpop.f32.mrb[0].mxu0
        %v2061 = vpop.f32.mrb[0].mxu0
        %v2062 = vpop.f32.mrb[0].mxu0
        %2063 = vdwg.mxu0
        %v2064 = vadd.f32 %v837, %v2059
        %v2065 = vld [vmem:[%s808] sm:$0x1]
        %v2066 = vld [vmem:[%s811] sm:$0x1]
        %v2067 = vsel %vm863, %v2064, 0.0
        %2068 = vadd.xlane.f32.xlu0 %v2067
        %v2069 = vpop.xlane.xlu0 %2068
        %v2070 = vrcp.pop 32.0
        %v2071 = vmul.f32 %v2069, %v2070
        %v2072 = vsub.f32 %v2064, %v2071
        %v2073 = vmul.f32 %v2072, %v2072
        %v2074 = vsel %vm863, %v2073, 0.0
        %2075 = vadd.xlane.f32.xlu0 %v2074
        %v2076 = vpop.xlane.xlu0 %2075
        %v2077 = vmul.f32 %v2076, %v2070
        %v2078 = vadd.f32 %v2077, 1e-05
        %v2079 = vrsqrt.pop %v2078
        %v2080 = vmul.f32 %v2072, %v2079
        %v2082 = vlaneseq
        %v2083 = vshrl.u32 %v2082, 7
        %v2084 = vsub.s32 0, %v2083
        %v2085 = vrot.slane %v2065, %v2084
        %v2087 = vmul.f32 %v2080, %v2085
        %v2089 = vlaneseq
        %v2090 = vshrl.u32 %v2089, 7
        %v2091 = vsub.s32 0, %v2090
        %v2092 = vrot.slane %v2066, %v2091
        %v2094 = vadd.f32 %v2087, %v2092
        %v2095 = vpack.c.bf16 %v2094, %v2094
        %v2096 = vld [vmem:[%s676] sm:$0xf]
        %v2097 = vld [vmem:[%s676 + $0x4] sm:$0xf]
        %v2098 = vld [vmem:[%s676 + $0x8] sm:$0xf]
        %v2099 = vld [vmem:[%s676 + $0xc] sm:$0xf]
        %v2100 = vld [vmem:[%s814] sm:$0x1]
        %v2102 = vlaneseq
        %v2103 = vshrl.u32 %v2102, 7
        %v2104 = vsub.s32 0, %v2103
        %v2105 = vrot.slane %v2100, %v2104
        %v2111 = vunpack.c.l.b16 %v2096
        %v2112 = vunpack.c.l.b16 %v2097
        %v2113 = vunpack.c.l.b16 %v2098
        %v2114 = vunpack.c.l.b16 %v2099
        %v2115 = vpack.c.b16 %v2112, %v2111
        %v2116 = vpack.c.b16 %v2114, %v2113
        %v2120 = vsel %vm863, %v2095, 0
        %2122 = vmatprep.subr.bf16.mxu0 0
        %2123 = vmatpush1.bf16.msra.mxu0 %v2115
        %2124 = vmatprep.subr.bf16.mxu0 0
        %2125 = vmatpush1.bf16.msra.mxu0 %v2116
        %2126 = vmatprep.subr.bf16.mxu0 0
        %2127 = vmatpush1.bf16.msra.mxu0 0
        %2128 = vmatprep.subr.bf16.mxu0 0
        %2129 = vmatpush1.bf16.msra.mxu0 0
        %2130 = vmatprep.subr.bf16.mxu0 0
        %2131 = vmatpush1.bf16.msra.mxu0 0
        %2132 = vmatprep.subr.bf16.mxu0 0
        %2133 = vmatpush1.bf16.msra.mxu0 0
        %2134 = vmatprep.subr.bf16.mxu0 0
        %2135 = vmatpush1.bf16.msra.mxu0 0
        %2136 = vmatprep.subr.bf16.mxu0 0
        %2137 = vmatpush1.bf16.msra.mxu0 0
        %2138 = vmatprep.subr.bf16.mxu0 0
        %2139 = vmatpush1.bf16.msra.mxu0 0
        %2140 = vmatprep.subr.bf16.mxu0 0
        %2141 = vmatpush1.bf16.msra.mxu0 0
        %2142 = vmatprep.subr.bf16.mxu0 0
        %2143 = vmatpush1.bf16.msra.mxu0 0
        %2144 = vmatprep.subr.bf16.mxu0 0
        %2145 = vmatpush1.bf16.msra.mxu0 0
        %2146 = vmatprep.subr.bf16.mxu0 0
        %2147 = vmatpush1.bf16.msra.mxu0 0
        %2148 = vmatprep.subr.bf16.mxu0 0
        %2149 = vmatpush1.bf16.msra.mxu0 0
        %2150 = vmatprep.subr.bf16.mxu0 0
        %2151 = vmatpush1.bf16.msra.mxu0 0
        %2152 = vmatprep.subr.bf16.mxu0 0
        %2153 = vmatpush1.bf16.msra.mxu0 0
        %2154 = vmatprep.mubr.bf16.mxu0 0
        %2155 = vmatmul.mubr.bf16.gmra.mrb[0].mxu0 %v2120
        %v2156 = vpop.f32.mrb[0].mxu0
        %v2157 = vadd.f32 %v2105, %v2156
        %v2158 = vpop.f32.mrb[0].mxu0
        %v2159 = vpop.f32.mrb[0].mxu0
        %v2160 = vpop.f32.mrb[0].mxu0
        %2161 = vdwg.mxu0
        %v2162 = vmax.f32 %v2157, 0.0
        %v2163 = vpack.c.bf16 %v2162, %v2162
        %v2164 = vld [vmem:[%s819] sm:$0xf]
        %v2165 = vld [vmem:[%s819 + $0x4] sm:$0xf]
        %v2166 = vld [vmem:[%s819 + $0x8] sm:$0xf]
        %v2167 = vld [vmem:[%s819 + $0xc] sm:$0xf]
        %v2168 = vld [vmem:[%s819 + $0x10] sm:$0xf]
        %v2169 = vld [vmem:[%s819 + $0x14] sm:$0xf]
        %v2170 = vld [vmem:[%s819 + $0x18] sm:$0xf]
        %v2171 = vld [vmem:[%s819 + $0x1c] sm:$0xf]
        %v2172 = vld [vmem:[%s822] sm:$0x1]
        %v2174 = vlaneseq
        %v2175 = vshrl.u32 %v2174, 7
        %v2176 = vsub.s32 0, %v2175
        %v2177 = vrot.slane %v2172, %v2176
        %v2187 = vunpack.c.l.b16 %v2164
        %v2188 = vunpack.c.l.b16 %v2165
        %v2189 = vunpack.c.l.b16 %v2166
        %v2190 = vunpack.c.l.b16 %v2167
        %v2191 = vunpack.c.l.b16 %v2168
        %v2192 = vunpack.c.l.b16 %v2169
        %v2193 = vunpack.c.l.b16 %v2170
        %v2194 = vunpack.c.l.b16 %v2171
        %v2195 = vpack.c.b16 %v2188, %v2187
        %v2196 = vpack.c.b16 %v2190, %v2189
        %v2197 = vpack.c.b16 %v2192, %v2191
        %v2198 = vpack.c.b16 %v2194, %v2193
        %vm2203 = vcmask 523264
        %v2205 = vsel %vm2203, %v2163, 0
        %2207 = vmatprep.subr.bf16.mxu0 0
        %2208 = vmatpush1.bf16.msra.mxu0 %v2195
        %2209 = vmatprep.subr.bf16.mxu0 0
        %2210 = vmatpush1.bf16.msra.mxu0 %v2196
        %2211 = vmatprep.subr.bf16.mxu0 0
        %2212 = vmatpush1.bf16.msra.mxu0 %v2197
        %2213 = vmatprep.subr.bf16.mxu0 0
        %2214 = vmatpush1.bf16.msra.mxu0 %v2198
        %2215 = vmatprep.subr.bf16.mxu0 0
        %2216 = vmatpush1.bf16.msra.mxu0 0
        %2217 = vmatprep.subr.bf16.mxu0 0
        %2218 = vmatpush1.bf16.msra.mxu0 0
        %2219 = vmatprep.subr.bf16.mxu0 0
        %2220 = vmatpush1.bf16.msra.mxu0 0
        %2221 = vmatprep.subr.bf16.mxu0 0
        %2222 = vmatpush1.bf16.msra.mxu0 0
        %2223 = vmatprep.subr.bf16.mxu0 0
        %2224 = vmatpush1.bf16.msra.mxu0 0
        %2225 = vmatprep.subr.bf16.mxu0 0
        %2226 = vmatpush1.bf16.msra.mxu0 0
        %2227 = vmatprep.subr.bf16.mxu0 0
        %2228 = vmatpush1.bf16.msra.mxu0 0
        %2229 = vmatprep.subr.bf16.mxu0 0
        %2230 = vmatpush1.bf16.msra.mxu0 0
        %2231 = vmatprep.subr.bf16.mxu0 0
        %2232 = vmatpush1.bf16.msra.mxu0 0
        %2233 = vmatprep.subr.bf16.mxu0 0
        %2234 = vmatpush1.bf16.msra.mxu0 0
        %2235 = vmatprep.subr.bf16.mxu0 0
        %2236 = vmatpush1.bf16.msra.mxu0 0
        %2237 = vmatprep.subr.bf16.mxu0 0
        %2238 = vmatpush1.bf16.msra.mxu0 0
        %2239 = vmatprep.mubr.bf16.mxu0 0
        %2240 = vmatmul.mubr.bf16.gmra.mrb[0].mxu0 %v2205
        %v2241 = vpop.f32.mrb[0].mxu0
        %v2242 = vadd.f32 %v2177, %v2241
        %v2243 = vpop.f32.mrb[0].mxu0
        %v2244 = vpop.f32.mrb[0].mxu0
        %v2245 = vpop.f32.mrb[0].mxu0
        %2246 = vdwg.mxu0
        %v2247 = vadd.f32 %v2094, %v2242
        %v2248 = vld [vmem:[%s825] sm:$0x1]
        %v2249 = vld [vmem:[%s828] sm:$0x1]
        %v2250 = vsel %vm863, %v2247, 0.0
        %2251 = vadd.xlane.f32.xlu0 %v2250
        %v2252 = vpop.xlane.xlu0 %2251
        %v2253 = vmul.f32 %v2252, %v2070
        %v2254 = vsub.f32 %v2247, %v2253
        %v2255 = vmul.f32 %v2254, %v2254
        %v2256 = vsel %vm863, %v2255, 0.0
        %2257 = vadd.xlane.f32.xlu0 %v2256
        %v2258 = vpop.xlane.xlu0 %2257
        %v2259 = vmul.f32 %v2258, %v2070
        %v2260 = vadd.f32 %v2259, 1e-05
        %v2261 = vrsqrt.pop %v2260
        %v2262 = vmul.f32 %v2254, %v2261
        %v2264 = vlaneseq
        %v2265 = vshrl.u32 %v2264, 7
        %v2266 = vsub.s32 0, %v2265
        %v2267 = vrot.slane %v2248, %v2266
        %v2269 = vmul.f32 %v2262, %v2267
        %v2271 = vlaneseq
        %v2272 = vshrl.u32 %v2271, 7
        %v2273 = vsub.s32 0, %v2272
        %v2274 = vrot.slane %v2249, %v2273
        %v2276 = vadd.f32 %v2269, %v2274
        %2277 = vst.msk [vmem:[#allocation2] sm:$0xff] %vm863, %v2276
        %p2278 = scmp.eq.s32.totalorder %s41, 1
        // Predicated region
        $region101: #{tpu_custom_call.1} parent=83 // pred_check
          %p2279 = pneg %p2278
        $region102: #{tpu_custom_call.1} parent=83 // pred_check_branch
          %2281 = sbr.rel (%p2279) target = $region104
        $region103: #{tpu_custom_call.1} parent=83 // pred_region
          %v2282 = vld [vmem:[#allocation2] sm:$0xff]
          %2283 = vst.msk [vmem:[%s781] sm:$0xff] %vm863, %v2282
        $region104: #{tpu_custom_call.1} parent=83 // pred_fallthru
          _
        %s2284 = sand.u32 %s472, 1
        %s2285 = scalar_lea.sflag [#allocation5], %s2284
        %s2286 = sand.u32 %s472, 1
        %s2287 = smul.addr %s2286, 8
        %s2288 = scalar_lea.vmem [#allocation9], %s2287
        // Predicated region
        $region105: #{tpu_custom_call.1} parent=83 // pred_check
          %p2289 = pneg %p482
        $region106: #{tpu_custom_call.1} parent=83 // pred_check_branch
          %2291 = sbr.rel (%p2289) target = $region108
        $region107: #{tpu_custom_call.1} parent=83 // pred_region
          %s2293 = ssub.s32 128, 128
          %2294 = vsyncadd %s2285, %s2293
          %s2295 = smul.addr %s40, 128
          %s2296 = scalar_lea.hbm %s16, %s2295
          %s2298 = sshll.u32 %s2288, 4
          %s2299 = int_to_ptr.vmem [resolvable:$true] %s2298
          %2301 = dma.vmem_to_hbm [thread:$0]  %s2299, 128, %s2296, %s2285
        $region108: #{tpu_custom_call.1} parent=83 // pred_fallthru
          _
      $region84: #{tpu_custom_call.1} parent=5 // pred_fallthru
        _
      %p2302 = scmp.le.s32.totalorder 2, %s31
      // Predicated region
      $region109: #{tpu_custom_call.1} parent=5 // pred_check
        %p2303 = pneg %p2302
      $region110: #{tpu_custom_call.1} parent=5 // pred_check_branch
        %2305 = sbr.rel (%p2303) target = $region112
      $region111: #{tpu_custom_call.1} parent=5 // pred_region
        %s2306 = ssub.s32 %s31, 2
        // Predicated region
        $region113: #{tpu_custom_call.1} parent=111 // pred_check
          %p2307 = pneg %p488
        $region114: #{tpu_custom_call.1} parent=111 // pred_check_branch
          %2309 = sbr.rel (%p2307) target = $region116
        $region115: #{tpu_custom_call.1} parent=111 // pred_region
          %s2310 = sand.u32 %s473, 1
          %s2311 = scalar_lea.sflag [#allocation5], %s2310
          %s2312 = sand.u32 %s473, 1
          %s2313 = smul.addr %s2312, 8
          %s2314 = scalar_lea.vmem [#allocation9], %s2313
          %2315 = dma.done %s2311, 128
        $region116: #{tpu_custom_call.1} parent=111 // pred_fallthru
          _
      $region112: #{tpu_custom_call.1} parent=5 // pred_fallthru
        _
    $region6: #{tpu_custom_call.1} parent=1 // loop_footer
      %s35 = sadd.s32 1, %s31
    $region7: #{tpu_custom_call.1} parent=1 // loop_footer_branch
      %30 = sbr.rel target = $region3
    $region8: #{tpu_custom_call.1} parent=1 // loop_exit
      _
    %2316 = vsyncpa [#allocation4], 1
    %s2317 = scalar_lea.sflag [#allocation4], 1
    %2318 = vsyncpa %s2317, 1
    %2319 = vsyncpa [#allocation7], 1
    %s2320 = scalar_lea.sflag [#allocation7], 1
    %2321 = vsyncpa %s2320, 1
    %2322 = vsyncpa [#allocation5], 1
    %s2323 = scalar_lea.sflag [#allocation5], 1
    %2324 = vsyncpa %s2323, 1

</llo_original>
